<compile_context>
chip_gen: v6e
topology: v6e:2x2x1
jax: 0.10.0
libtpu: 0.0.40
codegen_flags: <defaults>
</compile_context>

<pallas_src>
import functools

import jax
import jax.numpy as jnp
from jax import lax
from jax.experimental import pallas as pl
from jax.experimental.pallas import tpu as pltpu

EPS = 1e-5
_LANES = 128
_TILE_BUDGET_BYTES = 2 << 20   # per-row-tile budget (keeps VMEM use modest on all gens)


# ----------------------------- Pallas kernels ------------------------------

def _conv_stats_kernel(cols_ref, w_ref, z_ref, stats_ref):
    """Conv-as-matmul fused with the BN batch-statistics reduction.

    z = cols @ w on the MXU; per-lane sum and sum-of-squares accumulate into a
    resident (2, C) output across the row-tile grid, so z makes exactly one
    HBM write and no extra read for statistics.
    """
    z = jnp.dot(cols_ref[...], w_ref[...], preferred_element_type=jnp.float32)
    z_ref[...] = z

    @pl.when(pl.program_id(0) == 0)
    def _():
        stats_ref[...] = jnp.zeros_like(stats_ref)

    s = jnp.sum(z, axis=0, keepdims=True)        # (1, C)
    sq = jnp.sum(z * z, axis=0, keepdims=True)   # (1, C)
    stats_ref[...] += jnp.concatenate([s, sq], axis=0)


def _bn_relu_kernel(z_ref, p_ref, o_ref):
    """out = relu(z * scale + shift).  p rows: [scale, shift]."""
    p = p_ref[...]
    o_ref[...] = jnp.maximum(z_ref[...] * p[0:1, :] + p[1:2, :], 0.0)


def _bn_add_relu_kernel(z_ref, r_ref, p_ref, o_ref):
    """out = relu(z*scale_z + r*scale_r + shift).  p rows: [scale_z, scale_r, shift].

    Covers both the projection shortcut (r = shortcut conv output, scale_r/shift
    carry its BN affine) and the identity shortcut (scale_r = 1)."""
    p = p_ref[...]
    y = z_ref[...] * p[0:1, :] + r_ref[...] * p[1:2, :] + p[2:3, :]
    o_ref[...] = jnp.maximum(y, 0.0)


# ----------------------------- tiling helpers -------------------------------

def _fold_factor(c, m):
    """How many rows to fold into the 128-lane axis (lane-dense stores)."""
    if _LANES % c == 0:
        f = _LANES // c
        if m % f == 0:
            return f
    return 1


def _row_tile(m, row_bytes):
    """Whole array if it fits the budget, else the largest multiple-of-8 divisor
    of m that does (respects the (8, 128) block rule)."""
    max_rows = max(8, _TILE_BUDGET_BYTES // max(int(row_bytes), 4))
    if m <= max_rows:
        return m
    divisors = [d for d in range(8, max_rows + 1, 8) if m % d == 0]
    return max(divisors) if divisors else m


# ----------------------------- Pallas wrappers ------------------------------

def pallas_conv_stats(cols, w_mat, fold):
    """(M, K) @ (K, C) conv-as-matmul with fused channel statistics.

    Rows are folded `fold`-at-a-time into the lane axis via a block-diagonal
    weight so the output is lane-dense (fold*C lanes).  Returns the folded
    conv output (M//fold, fold*C) and per-channel (mean, biased var).
    """
    m, k = cols.shape
    c = w_mat.shape[1]
    cols_f = cols.reshape(m // fold, fold * k)                 # free row-major regroup
    w_f = jnp.kron(jnp.eye(fold, dtype=w_mat.dtype), w_mat)    # (fold*k, fold*c)
    mf, kf = cols_f.shape
    cf = fold * c
    tm = _row_tile(mf, (kf + cf) * 4)

    z_f, stats = pl.pallas_call(
        _conv_stats_kernel,
        out_shape=(jax.ShapeDtypeStruct((mf, cf), jnp.float32),
                   jax.ShapeDtypeStruct((2, cf), jnp.float32)),
        grid=(mf // tm,),
        in_specs=[pl.BlockSpec((tm, kf), lambda i: (i, 0)),
                  pl.BlockSpec((kf, cf), lambda i: (0, 0))],
        out_specs=(pl.BlockSpec((tm, cf), lambda i: (i, 0)),
                   pl.BlockSpec((2, cf), lambda i: (0, 0))),
        compiler_params=pltpu.CompilerParams(
            dimension_semantics=("arbitrary",)),   # stats accumulate across the grid
    )(cols_f, w_f)

    sums = stats.reshape(2, fold, c).sum(axis=1)
    mean = sums[0] / m
    var = jnp.maximum(sums[1] / m - mean * mean, 0.0)          # biased batch variance
    return z_f, mean, var


def pallas_bn_relu(z_f, scale, shift):
    mf, cf = z_f.shape
    p = jnp.stack([scale, shift], axis=0)                      # (2, cf)
    tm = _row_tile(mf, cf * 4 * 2)
    return pl.pallas_call(
        _bn_relu_kernel,
        out_shape=jax.ShapeDtypeStruct((mf, cf), jnp.float32),
        grid=(mf // tm,),
        in_specs=[pl.BlockSpec((tm, cf), lambda i: (i, 0)),
                  pl.BlockSpec((2, cf), lambda i: (0, 0))],
        out_specs=pl.BlockSpec((tm, cf), lambda i: (i, 0)),
        compiler_params=pltpu.CompilerParams(
            dimension_semantics=("parallel",)),
    )(z_f, p)


def pallas_bn_add_relu(z_f, r_f, scale_z, scale_r, shift):
    mf, cf = z_f.shape
    p = jnp.stack([scale_z, scale_r, shift], axis=0)           # (3, cf)
    tm = _row_tile(mf, cf * 4 * 3)
    return pl.pallas_call(
        _bn_add_relu_kernel,
        out_shape=jax.ShapeDtypeStruct((mf, cf), jnp.float32),
        grid=(mf // tm,),
        in_specs=[pl.BlockSpec((tm, cf), lambda i: (i, 0)),
                  pl.BlockSpec((tm, cf), lambda i: (i, 0)),
                  pl.BlockSpec((3, cf), lambda i: (0, 0))],
        out_specs=pl.BlockSpec((tm, cf), lambda i: (i, 0)),
        compiler_params=pltpu.CompilerParams(
            dimension_semantics=("parallel",)),
    )(z_f, r_f, p)


# ------------------------------- Glue (JAX) ---------------------------------

def im2col_3x3(x_nhwc, stride):
    """3x3, pad=1 im2col.  Returns (N*Ho*Wo, 9*Cin) and (Ho, Wo)."""
    n, h, w, cin = x_nhwc.shape
    ho = (h + 2 - 3) // stride + 1
    wo = (w + 2 - 3) // stride + 1
    xp = jnp.pad(x_nhwc, ((0, 0), (1, 1), (1, 1), (0, 0)))
    cols = []
    for ky in range(3):
        for kx in range(3):
            patch = lax.slice(
                xp,
                (0, ky, kx, 0),
                (n, ky + (ho - 1) * stride + 1, kx + (wo - 1) * stride + 1, cin),
                (1, stride, stride, 1))
            cols.append(patch)
    cols = jnp.stack(cols, axis=3)                             # (N, Ho, Wo, 9, Cin)
    return cols.reshape(n * ho * wo, 9 * cin), (ho, wo)


def _bn_affine(mean, var, gamma, beta):
    """Training-mode BN folded into per-channel scale/shift from batch stats."""
    scale = gamma * lax.rsqrt(var + EPS)
    shift = beta - mean * scale
    return scale, shift


@functools.partial(jax.jit, static_argnames=("stride",))
def basic_block_forward(x_nchw, params, *, stride):
    x = jnp.transpose(x_nchw, (0, 2, 3, 1)).astype(jnp.float32)   # NHWC
    n, h, w, cin = x.shape
    cout = params["conv1_w"].shape[0]

    cols1, (ho, wo) = im2col_3x3(x, stride)
    m = n * ho * wo
    fold = _fold_factor(cout, m)

    # conv1 -> bn1 -> relu  (no residual input -> no zero tensor materialized)
    w1 = params["conv1_w"].transpose(2, 3, 1, 0).reshape(9 * cin, cout)
    z1, mean1, var1 = pallas_conv_stats(cols1, w1, fold)
    s1, b1 = _bn_affine(mean1, var1, params["bn1_gamma"], params["bn1_beta"])
    h1 = pallas_bn_relu(z1, jnp.tile(s1, fold), jnp.tile(b1, fold))

    # conv2 -> bn2 (affine deferred into the final fused kernel)
    cols2, _ = im2col_3x3(h1.reshape(n, ho, wo, cout), 1)
    w2 = params["conv2_w"].transpose(2, 3, 1, 0).reshape(9 * cout, cout)
    z2, mean2, var2 = pallas_conv_stats(cols2, w2, fold)
    s2, b2 = _bn_affine(mean2, var2, params["bn2_gamma"], params["bn2_beta"])

    # shortcut: its BN affine is folded into the final kernel, so the shortcut
    # activation never takes an extra HBM round trip.
    if stride != 1 or cin != cout:
        xs = x[:, ::stride, ::stride, :].reshape(m, cin)
        ws = params["sc_conv_w"].reshape(cout, cin).T              # (Cin, Cout)
        zs, mean_s, var_s = pallas_conv_stats(xs, ws, fold)
        ss, bs = _bn_affine(mean_s, var_s,
                            params["sc_bn_gamma"], params["sc_bn_beta"])
        res = zs
        scale_r = jnp.tile(ss, fold)
        shift = jnp.tile(b2 + bs, fold)
    else:
        res = x.reshape(m // fold, fold * cout)                    # identity (same layout)
        scale_r = jnp.ones((fold * cout,), jnp.float32)
        shift = jnp.tile(b2, fold)

    # out = relu(bn2(conv2) + shortcut)
    out = pallas_bn_add_relu(z2, res, jnp.tile(s2, fold), scale_r, shift)
    out = out.reshape(n, ho, wo, cout)
    return jnp.transpose(out, (0, 3, 1, 2))                        # back to NCHW


# ----------------------------- Pure-JAX reference ---------------------------

def reference_forward(x, params, stride):
    def bn(y, g, b):
        mean = jnp.mean(y, axis=(0, 2, 3), keepdims=True)
        var = jnp.mean((y - mean) ** 2, axis=(0, 2, 3), keepdims=True)
        return ((y - mean) * lax.rsqrt(var + EPS) * g.reshape(1, -1, 1, 1)
                + b.reshape(1, -1, 1, 1))

    dn = ("NCHW", "OIHW", "NCHW")
    out = lax.conv_general_dilated(x, params["conv1_w"], (stride, stride),
                                   ((1, 1), (1, 1)), dimension_numbers=dn)
    out = jnp.maximum(bn(out, params["bn1_gamma"], params["bn1_beta"]), 0.0)
    out = lax.conv_general_dilated(out, params["conv2_w"], (1, 1),
                                   ((1, 1), (1, 1)), dimension_numbers=dn)
    out = bn(out, params["bn2_gamma"], params["bn2_beta"])
    cin = x.shape[1]
    cout = params["conv1_w"].shape[0]
    if stride != 1 or cin != cout:
        sc = lax.conv_general_dilated(x, params["sc_conv_w"], (stride, stride),
                                      ((0, 0), (0, 0)), dimension_numbers=dn)
        sc = bn(sc, params["sc_bn_gamma"], params["sc_bn_beta"])
    else:
        sc = x
    return jnp.maximum(out + sc, 0.0)


# ---------------------------------- Main -------------------------------------

def make_params(key, cin, cout):
    ks = jax.random.split(key, 8)
    return {
        "conv1_w": 0.1 * jax.random.normal(ks[0], (cout, cin, 3, 3), jnp.float32),
        "bn1_gamma": 1.0 + 0.1 * jax.random.normal(ks[1], (cout,), jnp.float32),
        "bn1_beta": 0.1 * jax.random.normal(ks[2], (cout,), jnp.float32),
        "conv2_w": 0.1 * jax.random.normal(ks[3], (cout, cout, 3, 3), jnp.float32),
        "bn2_gamma": 1.0 + 0.1 * jax.random.normal(ks[4], (cout,), jnp.float32),
        "bn2_beta": 0.1 * jax.random.normal(ks[5], (cout,), jnp.float32),
        "sc_conv_w": 0.1 * jax.random.normal(ks[6], (cout, cin, 1, 1), jnp.float32),
        "sc_bn_gamma": 1.0 + 0.1 * jax.random.normal(ks[7], (cout,), jnp.float32),
        "sc_bn_beta": jnp.zeros((cout,), jnp.float32),
    }


if __name__ == "__main__":
    key = jax.random.PRNGKey(0)
    k_x, k_p, k_x2, k_p2 = jax.random.split(key, 4)

    # Downsampling block: stride 2, 4 -> 8 channels (projection shortcut).
    x = jax.random.normal(k_x, (2, 4, 16, 16), jnp.float32)        # NCHW
    params = make_params(k_p, 4, 8)
    out = jax.block_until_ready(basic_block_forward(x, params, stride=2))
    ref = jax.block_until_ready(reference_forward(x, params, 2))
    assert out.shape == ref.shape, (out.shape, ref.shape)
    assert jnp.allclose(out, ref, atol=1e-3, rtol=1e-3), float(
        jnp.max(jnp.abs(out - ref)))

    # Identity block: stride 1, 8 -> 8 channels (identity shortcut path).
    x2 = jax.random.normal(k_x2, (2, 8, 16, 16), jnp.float32)
    params2 = make_params(k_p2, 8, 8)
    out2 = jax.block_until_ready(basic_block_forward(x2, params2, stride=1))
    ref2 = jax.block_until_ready(reference_forward(x2, params2, 1))
    assert jnp.allclose(out2, ref2, atol=1e-3, rtol=1e-3), float(
        jnp.max(jnp.abs(out2 - ref2)))

    print("KERNEL_OK")
</pallas_src>

<mosaic_0001>
module attributes {stable_mosaic.version = 11 : i64} {
  func.func @_conv_stats_kernel(%arg0: i32, %arg1: memref<8x576xf32, #tpu.memory_space<vmem>>, %arg2: memref<576x128xf32, #tpu.memory_space<vmem>>, %arg3: memref<8x128xf32, #tpu.memory_space<vmem>>, %arg4: memref<2x128xf32, #tpu.memory_space<vmem>>) attributes {dimension_semantics = [#tpu.dimension_semantics<arbitrary>], iteration_bounds = array<i64: 1>, scalar_prefetch = 0 : i64, scratch_operands = 0 : i64, tpu.core_type = #tpu.core_type<tc>, window_params = [{transform_indices = @transform_0, window_bounds = array<i64: 8, 576>}, {pipeline_mode = #tpu.pipeline_mode<synchronous>, transform_indices = @transform_1, window_bounds = array<i64: 576, 128>}, {transform_indices = @transform_2, window_bounds = array<i64: 8, 128>}, {pipeline_mode = #tpu.pipeline_mode<synchronous>, transform_indices = @transform_3, window_bounds = array<i64: 2, 128>}]} {
    %c0 = arith.constant 0 : index
    %c0_0 = arith.constant 0 : index
    %0 = vector.load %arg1[%c0, %c0_0] : memref<8x576xf32, #tpu.memory_space<vmem>>, vector<8x576xf32>
    %c0_1 = arith.constant 0 : index
    %c0_2 = arith.constant 0 : index
    %1 = vector.load %arg2[%c0_1, %c0_2] : memref<576x128xf32, #tpu.memory_space<vmem>>, vector<576x128xf32>
    %cst = arith.constant dense<0.000000e+00> : vector<8x128xf32>
    %2 = tpu.matmul %0, %1, %cst {dimension_numbers = #tpu.dot_dimension_numbers<[1], [0], [0], [1], [0, 0, 1, 1], [], []>} : vector<8x576xf32>, vector<576x128xf32>, vector<8x128xf32> -> vector<8x128xf32>
    %c0_3 = arith.constant 0 : index
    %c0_4 = arith.constant 0 : index
    %3 = vector.load %arg3[%c0_3, %c0_4] : memref<8x128xf32, #tpu.memory_space<vmem>>, vector<8x128xf32>
    tpu.vector_store %arg3[%c0_3, %c0_4], %2 {strides = array<i32>} : memref<8x128xf32, #tpu.memory_space<vmem>>, vector<8x128xf32>,
    %c0_i32 = arith.constant 0 : i32
    %4 = arith.cmpi eq, %arg0, %c0_i32 : i32
    %5 = arith.extui %4 : i1 to i32
    %c0_i32_5 = arith.constant 0 : i32
    %6 = arith.cmpi ne, %5, %c0_i32_5 : i32
    scf.if %6 {
      %cst_12 = arith.constant 0.000000e+00 : f32
      %16 = vector.broadcast %cst_12 : f32 to vector<2x128xf32>
      %c0_13 = arith.constant 0 : index
      %c0_14 = arith.constant 0 : index
      %17 = vector.load %arg4[%c0_13, %c0_14] : memref<2x128xf32, #tpu.memory_space<vmem>>, vector<2x128xf32>
      tpu.vector_store %arg4[%c0_13, %c0_14], %16 {strides = array<i32>} : memref<2x128xf32, #tpu.memory_space<vmem>>, vector<2x128xf32>,
    } else {
    }
    %cst_6 = arith.constant dense<0.000000e+00> : vector<128xf32>
    %7 = vector.multi_reduction <add>, %2, %cst_6 [0] : vector<8x128xf32> to vector<128xf32>
    %8 = vector.shape_cast %7 : vector<128xf32> to vector<1x128xf32>
    %9 = arith.mulf %2, %2 : vector<8x128xf32>
    %cst_7 = arith.constant dense<0.000000e+00> : vector<128xf32>
    %10 = vector.multi_reduction <add>, %9, %cst_7 [0] : vector<8x128xf32> to vector<128xf32>
    %11 = vector.shape_cast %10 : vector<128xf32> to vector<1x128xf32>
    %c0_8 = arith.constant 0 : index
    %c0_9 = arith.constant 0 : index
    %12 = vector.load %arg4[%c0_8, %c0_9] : memref<2x128xf32, #tpu.memory_space<vmem>>, vector<2x128xf32>
    %13 = tpu.concatenate %8, %11 in 0 : vector<1x128xf32>, vector<1x128xf32> -> vector<2x128xf32>
    %14 = arith.addf %12, %13 : vector<2x128xf32>
    %c0_10 = arith.constant 0 : index
    %c0_11 = arith.constant 0 : index
    %15 = vector.load %arg4[%c0_10, %c0_11] : memref<2x128xf32, #tpu.memory_space<vmem>>, vector<2x128xf32>
    tpu.vector_store %arg4[%c0_10, %c0_11], %14 {strides = array<i32>} : memref<2x128xf32, #tpu.memory_space<vmem>>, vector<2x128xf32>,
    return
  }
  func.func @transform_0(%arg0: i32) -> (i32, i32) {
    %c0_i32 = arith.constant 0 : i32
    %c0_i32_0 = arith.constant 0 : i32
    return %arg0, %c0_i32 : i32, i32
  }
  func.func @transform_1(%arg0: i32) -> (i32, i32) {
    %c0_i32 = arith.constant 0 : i32
    %c0_i32_0 = arith.constant 0 : i32
    %c0_i32_1 = arith.constant 0 : i32
    return %c0_i32, %c0_i32_0 : i32, i32
  }
  func.func @transform_2(%arg0: i32) -> (i32, i32) {
    %c0_i32 = arith.constant 0 : i32
    %c0_i32_0 = arith.constant 0 : i32
    return %arg0, %c0_i32 : i32, i32
  }
  func.func @transform_3(%arg0: i32) -> (i32, i32) {
    %c0_i32 = arith.constant 0 : i32
    %c0_i32_0 = arith.constant 0 : i32
    %c0_i32_1 = arith.constant 0 : i32
    return %c0_i32, %c0_i32_0 : i32, i32
  }
}

module attributes {stable_mosaic.version = 11 : i64} {
  func.func @_bn_relu_kernel(%arg0: i32, %arg1: memref<8x128xf32, #tpu.memory_space<vmem>>, %arg2: memref<2x128xf32, #tpu.memory_space<vmem>>, %arg3: memref<8x128xf32, #tpu.memory_space<vmem>>) attributes {dimension_semantics = [#tpu.dimension_semantics<parallel>], iteration_bounds = array<i64: 1>, scalar_prefetch = 0 : i64, scratch_operands = 0 : i64, tpu.core_type = #tpu.core_type<tc>, window_params = [{transform_indices = @transform_0, window_bounds = array<i64: 8, 128>}, {pipeline_mode = #tpu.pipeline_mode<synchronous>, transform_indices = @transform_1, window_bounds = array<i64: 2, 128>}, {transform_indices = @transform_2, window_bounds = array<i64: 8, 128>}]} {
    %c0 = arith.constant 0 : index
    %c0_0 = arith.constant 0 : index
    %0 = vector.load %arg2[%c0, %c0_0] : memref<2x128xf32, #tpu.memory_space<vmem>>, vector<2x128xf32>
    %c0_1 = arith.constant 0 : index
    %c0_2 = arith.constant 0 : index
    %1 = vector.load %arg1[%c0_1, %c0_2] : memref<8x128xf32, #tpu.memory_space<vmem>>, vector<8x128xf32>
    %2 = vector.extract_strided_slice %0 {offsets = [0, 0], sizes = [1, 128], strides = [1, 1]} : vector<2x128xf32> to vector<1x128xf32>
    %3 = vector.broadcast %2 : vector<1x128xf32> to vector<8x128xf32>
    %4 = arith.mulf %1, %3 : vector<8x128xf32>
    %5 = vector.extract_strided_slice %0 {offsets = [1, 0], sizes = [1, 128], strides = [1, 1]} : vector<2x128xf32> to vector<1x128xf32>
    %6 = vector.broadcast %5 : vector<1x128xf32> to vector<8x128xf32>
    %7 = arith.addf %4, %6 : vector<8x128xf32>
    %cst = arith.constant 0.000000e+00 : f32
    %8 = vector.broadcast %cst : f32 to vector<8x128xf32>
    %9 = arith.maximumf %7, %8 : vector<8x128xf32>
    %c0_3 = arith.constant 0 : index
    %c0_4 = arith.constant 0 : index
    %10 = vector.load %arg3[%c0_3, %c0_4] : memref<8x128xf32, #tpu.memory_space<vmem>>, vector<8x128xf32>
    tpu.vector_store %arg3[%c0_3, %c0_4], %9 {strides = array<i32>} : memref<8x128xf32, #tpu.memory_space<vmem>>, vector<8x128xf32>,
    return
  }
  func.func @transform_0(%arg0: i32) -> (i32, i32) {
    %c0_i32 = arith.constant 0 : i32
    %c0_i32_0 = arith.constant 0 : i32
    return %arg0, %c0_i32 : i32, i32
  }
  func.func @transform_1(%arg0: i32) -> (i32, i32) {
    %c0_i32 = arith.constant 0 : i32
    %c0_i32_0 = arith.constant 0 : i32
    %c0_i32_1 = arith.constant 0 : i32
    return %c0_i32, %c0_i32_0 : i32, i32
  }
  func.func @transform_2(%arg0: i32) -> (i32, i32) {
    %c0_i32 = arith.constant 0 : i32
    %c0_i32_0 = arith.constant 0 : i32
    return %arg0, %c0_i32 : i32, i32
  }
}

module attributes {stable_mosaic.version = 11 : i64} {
  func.func @_conv_stats_kernel(%arg0: i32, %arg1: memref<8x1152xf32, #tpu.memory_space<vmem>>, %arg2: memref<1152x128xf32, #tpu.memory_space<vmem>>, %arg3: memref<8x128xf32, #tpu.memory_space<vmem>>, %arg4: memref<2x128xf32, #tpu.memory_space<vmem>>) attributes {dimension_semantics = [#tpu.dimension_semantics<arbitrary>], iteration_bounds = array<i64: 1>, scalar_prefetch = 0 : i64, scratch_operands = 0 : i64, tpu.core_type = #tpu.core_type<tc>, window_params = [{transform_indices = @transform_0, window_bounds = array<i64: 8, 1152>}, {pipeline_mode = #tpu.pipeline_mode<synchronous>, transform_indices = @transform_1, window_bounds = array<i64: 1152, 128>}, {transform_indices = @transform_2, window_bounds = array<i64: 8, 128>}, {pipeline_mode = #tpu.pipeline_mode<synchronous>, transform_indices = @transform_3, window_bounds = array<i64: 2, 128>}]} {
    %c0 = arith.constant 0 : index
    %c0_0 = arith.constant 0 : index
    %0 = vector.load %arg1[%c0, %c0_0] : memref<8x1152xf32, #tpu.memory_space<vmem>>, vector<8x1152xf32>
    %c0_1 = arith.constant 0 : index
    %c0_2 = arith.constant 0 : index
    %1 = vector.load %arg2[%c0_1, %c0_2] : memref<1152x128xf32, #tpu.memory_space<vmem>>, vector<1152x128xf32>
    %cst = arith.constant dense<0.000000e+00> : vector<8x128xf32>
    %2 = tpu.matmul %0, %1, %cst {dimension_numbers = #tpu.dot_dimension_numbers<[1], [0], [0], [1], [0, 0, 1, 1], [], []>} : vector<8x1152xf32>, vector<1152x128xf32>, vector<8x128xf32> -> vector<8x128xf32>
    %c0_3 = arith.constant 0 : index
    %c0_4 = arith.constant 0 : index
    %3 = vector.load %arg3[%c0_3, %c0_4] : memref<8x128xf32, #tpu.memory_space<vmem>>, vector<8x128xf32>
    tpu.vector_store %arg3[%c0_3, %c0_4], %2 {strides = array<i32>} : memref<8x128xf32, #tpu.memory_space<vmem>>, vector<8x128xf32>,
    %c0_i32 = arith.constant 0 : i32
    %4 = arith.cmpi eq, %arg0, %c0_i32 : i32
    %5 = arith.extui %4 : i1 to i32
    %c0_i32_5 = arith.constant 0 : i32
    %6 = arith.cmpi ne, %5, %c0_i32_5 : i32
    scf.if %6 {
      %cst_12 = arith.constant 0.000000e+00 : f32
      %16 = vector.broadcast %cst_12 : f32 to vector<2x128xf32>
      %c0_13 = arith.constant 0 : index
      %c0_14 = arith.constant 0 : index
      %17 = vector.load %arg4[%c0_13, %c0_14] : memref<2x128xf32, #tpu.memory_space<vmem>>, vector<2x128xf32>
      tpu.vector_store %arg4[%c0_13, %c0_14], %16 {strides = array<i32>} : memref<2x128xf32, #tpu.memory_space<vmem>>, vector<2x128xf32>,
    } else {
    }
    %cst_6 = arith.constant dense<0.000000e+00> : vector<128xf32>
    %7 = vector.multi_reduction <add>, %2, %cst_6 [0] : vector<8x128xf32> to vector<128xf32>
    %8 = vector.shape_cast %7 : vector<128xf32> to vector<1x128xf32>
    %9 = arith.mulf %2, %2 : vector<8x128xf32>
    %cst_7 = arith.constant dense<0.000000e+00> : vector<128xf32>
    %10 = vector.multi_reduction <add>, %9, %cst_7 [0] : vector<8x128xf32> to vector<128xf32>
    %11 = vector.shape_cast %10 : vector<128xf32> to vector<1x128xf32>
    %c0_8 = arith.constant 0 : index
    %c0_9 = arith.constant 0 : index
    %12 = vector.load %arg4[%c0_8, %c0_9] : memref<2x128xf32, #tpu.memory_space<vmem>>, vector<2x128xf32>
    %13 = tpu.concatenate %8, %11 in 0 : vector<1x128xf32>, vector<1x128xf32> -> vector<2x128xf32>
    %14 = arith.addf %12, %13 : vector<2x128xf32>
    %c0_10 = arith.constant 0 : index
    %c0_11 = arith.constant 0 : index
    %15 = vector.load %arg4[%c0_10, %c0_11] : memref<2x128xf32, #tpu.memory_space<vmem>>, vector<2x128xf32>
    tpu.vector_store %arg4[%c0_10, %c0_11], %14 {strides = array<i32>} : memref<2x128xf32, #tpu.memory_space<vmem>>, vector<2x128xf32>,
    return
  }
  func.func @transform_0(%arg0: i32) -> (i32, i32) {
    %c0_i32 = arith.constant 0 : i32
    %c0_i32_0 = arith.constant 0 : i32
    return %arg0, %c0_i32 : i32, i32
  }
  func.func @transform_1(%arg0: i32) -> (i32, i32) {
    %c0_i32 = arith.constant 0 : i32
    %c0_i32_0 = arith.constant 0 : i32
    %c0_i32_1 = arith.constant 0 : i32
    return %c0_i32, %c0_i32_0 : i32, i32
  }
  func.func @transform_2(%arg0: i32) -> (i32, i32) {
    %c0_i32 = arith.constant 0 : i32
    %c0_i32_0 = arith.constant 0 : i32
    return %arg0, %c0_i32 : i32, i32
  }
  func.func @transform_3(%arg0: i32) -> (i32, i32) {
    %c0_i32 = arith.constant 0 : i32
    %c0_i32_0 = arith.constant 0 : i32
    %c0_i32_1 = arith.constant 0 : i32
    return %c0_i32, %c0_i32_0 : i32, i32
  }
}

module attributes {stable_mosaic.version = 11 : i64} {
  func.func @_conv_stats_kernel(%arg0: i32, %arg1: memref<8x64xf32, #tpu.memory_space<vmem>>, %arg2: memref<64x128xf32, #tpu.memory_space<vmem>>, %arg3: memref<8x128xf32, #tpu.memory_space<vmem>>, %arg4: memref<2x128xf32, #tpu.memory_space<vmem>>) attributes {dimension_semantics = [#tpu.dimension_semantics<arbitrary>], iteration_bounds = array<i64: 1>, scalar_prefetch = 0 : i64, scratch_operands = 0 : i64, tpu.core_type = #tpu.core_type<tc>, window_params = [{transform_indices = @transform_0, window_bounds = array<i64: 8, 64>}, {pipeline_mode = #tpu.pipeline_mode<synchronous>, transform_indices = @transform_1, window_bounds = array<i64: 64, 128>}, {transform_indices = @transform_2, window_bounds = array<i64: 8, 128>}, {pipeline_mode = #tpu.pipeline_mode<synchronous>, transform_indices = @transform_3, window_bounds = array<i64: 2, 128>}]} {
    %c0 = arith.constant 0 : index
    %c0_0 = arith.constant 0 : index
    %0 = vector.load %arg1[%c0, %c0_0] : memref<8x64xf32, #tpu.memory_space<vmem>>, vector<8x64xf32>
    %c0_1 = arith.constant 0 : index
    %c0_2 = arith.constant 0 : index
    %1 = vector.load %arg2[%c0_1, %c0_2] : memref<64x128xf32, #tpu.memory_space<vmem>>, vector<64x128xf32>
    %cst = arith.constant dense<0.000000e+00> : vector<8x128xf32>
    %2 = tpu.matmul %0, %1, %cst {dimension_numbers = #tpu.dot_dimension_numbers<[1], [0], [0], [1], [0, 0, 1, 1], [], []>} : vector<8x64xf32>, vector<64x128xf32>, vector<8x128xf32> -> vector<8x128xf32>
    %c0_3 = arith.constant 0 : index
    %c0_4 = arith.constant 0 : index
    %3 = vector.load %arg3[%c0_3, %c0_4] : memref<8x128xf32, #tpu.memory_space<vmem>>, vector<8x128xf32>
    tpu.vector_store %arg3[%c0_3, %c0_4], %2 {strides = array<i32>} : memref<8x128xf32, #tpu.memory_space<vmem>>, vector<8x128xf32>,
    %c0_i32 = arith.constant 0 : i32
    %4 = arith.cmpi eq, %arg0, %c0_i32 : i32
    %5 = arith.extui %4 : i1 to i32
    %c0_i32_5 = arith.constant 0 : i32
    %6 = arith.cmpi ne, %5, %c0_i32_5 : i32
    scf.if %6 {
      %cst_12 = arith.constant 0.000000e+00 : f32
      %16 = vector.broadcast %cst_12 : f32 to vector<2x128xf32>
      %c0_13 = arith.constant 0 : index
      %c0_14 = arith.constant 0 : index
      %17 = vector.load %arg4[%c0_13, %c0_14] : memref<2x128xf32, #tpu.memory_space<vmem>>, vector<2x128xf32>
      tpu.vector_store %arg4[%c0_13, %c0_14], %16 {strides = array<i32>} : memref<2x128xf32, #tpu.memory_space<vmem>>, vector<2x128xf32>,
    } else {
    }
    %cst_6 = arith.constant dense<0.000000e+00> : vector<128xf32>
    %7 = vector.multi_reduction <add>, %2, %cst_6 [0] : vector<8x128xf32> to vector<128xf32>
    %8 = vector.shape_cast %7 : vector<128xf32> to vector<1x128xf32>
    %9 = arith.mulf %2, %2 : vector<8x128xf32>
    %cst_7 = arith.constant dense<0.000000e+00> : vector<128xf32>
    %10 = vector.multi_reduction <add>, %9, %cst_7 [0] : vector<8x128xf32> to vector<128xf32>
    %11 = vector.shape_cast %10 : vector<128xf32> to vector<1x128xf32>
    %c0_8 = arith.constant 0 : index
    %c0_9 = arith.constant 0 : index
    %12 = vector.load %arg4[%c0_8, %c0_9] : memref<2x128xf32, #tpu.memory_space<vmem>>, vector<2x128xf32>
    %13 = tpu.concatenate %8, %11 in 0 : vector<1x128xf32>, vector<1x128xf32> -> vector<2x128xf32>
    %14 = arith.addf %12, %13 : vector<2x128xf32>
    %c0_10 = arith.constant 0 : index
    %c0_11 = arith.constant 0 : index
    %15 = vector.load %arg4[%c0_10, %c0_11] : memref<2x128xf32, #tpu.memory_space<vmem>>, vector<2x128xf32>
    tpu.vector_store %arg4[%c0_10, %c0_11], %14 {strides = array<i32>} : memref<2x128xf32, #tpu.memory_space<vmem>>, vector<2x128xf32>,
    return
  }
  func.func @transform_0(%arg0: i32) -> (i32, i32) {
    %c0_i32 = arith.constant 0 : i32
    %c0_i32_0 = arith.constant 0 : i32
    return %arg0, %c0_i32 : i32, i32
  }
  func.func @transform_1(%arg0: i32) -> (i32, i32) {
    %c0_i32 = arith.constant 0 : i32
    %c0_i32_0 = arith.constant 0 : i32
    %c0_i32_1 = arith.constant 0 : i32
    return %c0_i32, %c0_i32_0 : i32, i32
  }
  func.func @transform_2(%arg0: i32) -> (i32, i32) {
    %c0_i32 = arith.constant 0 : i32
    %c0_i32_0 = arith.constant 0 : i32
    return %arg0, %c0_i32 : i32, i32
  }
  func.func @transform_3(%arg0: i32) -> (i32, i32) {
    %c0_i32 = arith.constant 0 : i32
    %c0_i32_0 = arith.constant 0 : i32
    %c0_i32_1 = arith.constant 0 : i32
    return %c0_i32, %c0_i32_0 : i32, i32
  }
}

module attributes {stable_mosaic.version = 11 : i64} {
  func.func @_bn_add_relu_kernel(%arg0: i32, %arg1: memref<8x128xf32, #tpu.memory_space<vmem>>, %arg2: memref<8x128xf32, #tpu.memory_space<vmem>>, %arg3: memref<3x128xf32, #tpu.memory_space<vmem>>, %arg4: memref<8x128xf32, #tpu.memory_space<vmem>>) attributes {dimension_semantics = [#tpu.dimension_semantics<parallel>], iteration_bounds = array<i64: 1>, scalar_prefetch = 0 : i64, scratch_operands = 0 : i64, tpu.core_type = #tpu.core_type<tc>, window_params = [{transform_indices = @transform_0, window_bounds = array<i64: 8, 128>}, {transform_indices = @transform_1, window_bounds = array<i64: 8, 128>}, {pipeline_mode = #tpu.pipeline_mode<synchronous>, transform_indices = @transform_2, window_bounds = array<i64: 3, 128>}, {transform_indices = @transform_3, window_bounds = array<i64: 8, 128>}]} {
    %c0 = arith.constant 0 : index
    %c0_0 = arith.constant 0 : index
    %0 = vector.load %arg3[%c0, %c0_0] : memref<3x128xf32, #tpu.memory_space<vmem>>, vector<3x128xf32>
    %c0_1 = arith.constant 0 : index
    %c0_2 = arith.constant 0 : index
    %1 = vector.load %arg1[%c0_1, %c0_2] : memref<8x128xf32, #tpu.memory_space<vmem>>, vector<8x128xf32>
    %2 = vector.extract_strided_slice %0 {offsets = [0, 0], sizes = [1, 128], strides = [1, 1]} : vector<3x128xf32> to vector<1x128xf32>
    %3 = vector.broadcast %2 : vector<1x128xf32> to vector<8x128xf32>
    %4 = arith.mulf %1, %3 : vector<8x128xf32>
    %c0_3 = arith.constant 0 : index
    %c0_4 = arith.constant 0 : index
    %5 = vector.load %arg2[%c0_3, %c0_4] : memref<8x128xf32, #tpu.memory_space<vmem>>, vector<8x128xf32>
    %6 = vector.extract_strided_slice %0 {offsets = [1, 0], sizes = [1, 128], strides = [1, 1]} : vector<3x128xf32> to vector<1x128xf32>
    %7 = vector.broadcast %6 : vector<1x128xf32> to vector<8x128xf32>
    %8 = arith.mulf %5, %7 : vector<8x128xf32>
    %9 = arith.addf %4, %8 : vector<8x128xf32>
    %10 = vector.extract_strided_slice %0 {offsets = [2, 0], sizes = [1, 128], strides = [1, 1]} : vector<3x128xf32> to vector<1x128xf32>
    %11 = vector.broadcast %10 : vector<1x128xf32> to vector<8x128xf32>
    %12 = arith.addf %9, %11 : vector<8x128xf32>
    %cst = arith.constant 0.000000e+00 : f32
    %13 = vector.broadcast %cst : f32 to vector<8x128xf32>
    %14 = arith.maximumf %12, %13 : vector<8x128xf32>
    %c0_5 = arith.constant 0 : index
    %c0_6 = arith.constant 0 : index
    %15 = vector.load %arg4[%c0_5, %c0_6] : memref<8x128xf32, #tpu.memory_space<vmem>>, vector<8x128xf32>
    tpu.vector_store %arg4[%c0_5, %c0_6], %14 {strides = array<i32>} : memref<8x128xf32, #tpu.memory_space<vmem>>, vector<8x128xf32>,
    return
  }
  func.func @transform_0(%arg0: i32) -> (i32, i32) {
    %c0_i32 = arith.constant 0 : i32
    %c0_i32_0 = arith.constant 0 : i32
    return %arg0, %c0_i32 : i32, i32
  }
  func.func @transform_1(%arg0: i32) -> (i32, i32) {
    %c0_i32 = arith.constant 0 : i32
    %c0_i32_0 = arith.constant 0 : i32
    return %arg0, %c0_i32 : i32, i32
  }
  func.func @transform_2(%arg0: i32) -> (i32, i32) {
    %c0_i32 = arith.constant 0 : i32
    %c0_i32_0 = arith.constant 0 : i32
    %c0_i32_1 = arith.constant 0 : i32
    return %c0_i32, %c0_i32_0 : i32, i32
  }
  func.func @transform_3(%arg0: i32) -> (i32, i32) {
    %c0_i32 = arith.constant 0 : i32
    %c0_i32_0 = arith.constant 0 : i32
    return %arg0, %c0_i32 : i32, i32
  }
}

</mosaic_0001>

<llo_original>
// kernel: mul.4
$region0: #{mul.4}
  %s0 = inlined_call_operand.vmem [shape: f32[3,3,4,8], index: 0, kind: input, shape index: {}]
  %s1 = inlined_call_operand.vmem [shape: f32[36,8], index: 1, kind: output, shape index: {}]
  $region1: #{mul.4} parent=0
    #allocation0 [shape = 'u8[36864]{0}', space=vmem, size = 0x9000, scoped, tag = 'scoped mem for input reshape']
    %s3 = sshll.u32 1, 4
    %s4 = ssub.s32 %s3, 1
    %s5 = smul.addr 4, 8
    %s6 = scalar_lea.vmem %s0, %s5
    %v7 = vld [vmem:[%s6] sm:%s4]
    %s8 = scalar_lea.vmem [#allocation0], 64
    %9 = vst [vmem:[%s8] sm:%s4] %v7
    %s10 = smul.addr 4, 7
    %s11 = scalar_lea.vmem %s0, %s10
    %v12 = vld [vmem:[%s11] sm:%s4]
    %s13 = scalar_lea.vmem [#allocation0], 56
    %14 = vst [vmem:[%s13] sm:%s4] %v12
    %s15 = smul.addr 4, 6
    %s16 = scalar_lea.vmem %s0, %s15
    %v17 = vld [vmem:[%s16] sm:%s4]
    %s18 = scalar_lea.vmem [#allocation0], 48
    %19 = vst [vmem:[%s18] sm:%s4] %v17
    %s20 = smul.addr 4, 5
    %s21 = scalar_lea.vmem %s0, %s20
    %v22 = vld [vmem:[%s21] sm:%s4]
    %s23 = scalar_lea.vmem [#allocation0], 40
    %24 = vst [vmem:[%s23] sm:%s4] %v22
    %s25 = smul.addr 4, 4
    %s26 = scalar_lea.vmem %s0, %s25
    %v27 = vld [vmem:[%s26] sm:%s4]
    %s28 = scalar_lea.vmem [#allocation0], 32
    %29 = vst [vmem:[%s28] sm:%s4] %v27
    %s30 = smul.addr 4, 3
    %s31 = scalar_lea.vmem %s0, %s30
    %v32 = vld [vmem:[%s31] sm:%s4]
    %s33 = scalar_lea.vmem [#allocation0], 24
    %34 = vst [vmem:[%s33] sm:%s4] %v32
    %s35 = smul.addr 4, 2
    %s36 = scalar_lea.vmem %s0, %s35
    %v37 = vld [vmem:[%s36] sm:%s4]
    %s38 = scalar_lea.vmem [#allocation0], 16
    %39 = vst [vmem:[%s38] sm:%s4] %v37
    %s40 = scalar_lea.vmem %s0, 4
    %v41 = vld [vmem:[%s40] sm:%s4]
    %s42 = scalar_lea.vmem [#allocation0], 8
    %43 = vst [vmem:[%s42] sm:%s4] %v41
    %v44 = vld [vmem:[%s0] sm:%s4]
    %45 = vst [vmem:[#allocation0] sm:%s4] %v44
    %v46 = vld [vmem:[#allocation0] sm:$0xf]
    %vm47 = vcmask 64512
    %48 = vst.msk [vmem:[%s1] sm:$0xf] %vm47, %v46
    %s49 = scalar_lea.vmem [#allocation0], 8
    %v50 = vld [vmem:[%s49] sm:$0xf]
    %vm51 = vcmask 64512
    %s52 = scalar_lea.vmem %s1, 4
    %53 = vst.msk [vmem:[%s52] sm:$0xf] %vm51, %v50
    %s54 = scalar_lea.vmem [#allocation0], 16
    %v55 = vld [vmem:[%s54] sm:$0xf]
    %vm56 = vcmask 64512
    %s57 = scalar_lea.vmem %s1, 8
    %58 = vst.msk [vmem:[%s57] sm:$0xf] %vm56, %v55
    %s59 = scalar_lea.vmem [#allocation0], 24
    %v60 = vld [vmem:[%s59] sm:$0xf]
    %vm61 = vcmask 64512
    %s62 = scalar_lea.vmem %s1, 12
    %63 = vst.msk [vmem:[%s62] sm:$0xf] %vm61, %v60
    %s64 = scalar_lea.vmem [#allocation0], 32
    %v65 = vld [vmem:[%s64] sm:$0xf]
    %vm66 = vcmask 64512
    %s67 = scalar_lea.vmem %s1, 16
    %68 = vst.msk [vmem:[%s67] sm:$0xf] %vm66, %v65
    %s69 = scalar_lea.vmem [#allocation0], 40
    %v70 = vld [vmem:[%s69] sm:$0xf]
    %vm71 = vcmask 64512
    %s72 = scalar_lea.vmem %s1, 20
    %73 = vst.msk [vmem:[%s72] sm:$0xf] %vm71, %v70
    %s74 = scalar_lea.vmem [#allocation0], 48
    %v75 = vld [vmem:[%s74] sm:$0xf]
    %vm76 = vcmask 64512
    %s77 = scalar_lea.vmem %s1, 24
    %78 = vst.msk [vmem:[%s77] sm:$0xf] %vm76, %v75
    %s79 = scalar_lea.vmem [#allocation0], 56
    %v80 = vld [vmem:[%s79] sm:$0xf]
    %vm81 = vcmask 64512
    %s82 = scalar_lea.vmem %s1, 28
    %83 = vst.msk [vmem:[%s82] sm:$0xf] %vm81, %v80
    %s84 = scalar_lea.vmem [#allocation0], 64
    %v85 = vld [vmem:[%s84] sm:$0xf]
    %vm86 = vcmask 64512
    %s87 = scalar_lea.vmem %s1, 32
    %88 = vst.msk [vmem:[%s87] sm:$0xf] %vm86, %v85

// kernel: tile.28
$region0: #{tile.28}
  #allocation0 [shape = 's32[1]{0}', space=sflag, size = 0x4, scoped, tag = 'scoped memory for tile.28']
  %s0 = inlined_call_operand.vmem [shape: f32[8], index: 0, kind: input, shape index: {}]
  %s1 = inlined_call_operand.vmem [shape: f32[16,8], index: 1, kind: output, shape index: {}]
  // Predicated region
  $region2: #{tile.28} parent=0 // pred_check
    _
  $region3: #{tile.28} parent=0 // pred_check_branch
    %3 = sbr.rel (0) target = $region5
  $region4: #{tile.28} parent=0 // pred_region
    _
  $region5: #{tile.28} parent=0 // pred_fallthru
    _
  %v4 = vld [vmem:[%s0] ss:$0 sm:$0xff]
  %5 = vst [vmem:[%s1] sm:$0xff] %v4
  %s6 = scalar_lea.vmem %s1, 8
  %7 = vst [vmem:[%s6] sm:$0xff] %v4

// kernel: tile.33
$region0: #{tile.33}
  %s0 = inlined_call_operand.vmem [shape: f32[16,8], index: 0, kind: input, shape index: {}]
  %s1 = inlined_call_operand.vmem [shape: f32[1,128], index: 1, kind: output, shape index: {}]
  $region1: #{tile.33} parent=0
    #allocation0 [shape = 'u8[4096]{0}', space=vmem, size = 0x1000, scoped, tag = 'scoped mem for output reshape']
    %v2 = vld [vmem:[%s0] sm:$0x1]
    %vm3 = vcmask 64512
    %4 = vst.msk [vmem:[#allocation0] sm:$0x1] %vm3, %v2
    %s5 = scalar_lea.vmem %s0, 15
    %v6 = vld [vmem:[%s5] sm:$0x1]
    %7 = vrot.lane.b32.xlu0 %v6, 120
    %v8 = vpop.permute.xlu0 %7
    %vm9 = vcmask 1048512
    %10 = vst.msk [vmem:[#allocation0] sm:$0x1] %vm9, %v8
    %s11 = scalar_lea.vmem %s0, 14
    %v12 = vld [vmem:[%s11] sm:$0x1]
    %13 = vrot.lane.b32.xlu0 %v12, 112
    %v14 = vpop.permute.xlu0 %13
    %vm15 = vcmask 982912
    %16 = vst.msk [vmem:[#allocation0] sm:$0x1] %vm15, %v14
    %s17 = scalar_lea.vmem %s0, 13
    %v18 = vld [vmem:[%s17] sm:$0x1]
    %19 = vrot.lane.b32.xlu0 %v18, 104
    %v20 = vpop.permute.xlu0 %19
    %vm21 = vcmask 917312
    %22 = vst.msk [vmem:[#allocation0] sm:$0x1] %vm21, %v20
    %s23 = scalar_lea.vmem %s0, 12
    %v24 = vld [vmem:[%s23] sm:$0x1]
    %25 = vrot.lane.b32.xlu0 %v24, 96
    %v26 = vpop.permute.xlu0 %25
    %vm27 = vcmask 851712
    %28 = vst.msk [vmem:[#allocation0] sm:$0x1] %vm27, %v26
    %s29 = scalar_lea.vmem %s0, 11
    %v30 = vld [vmem:[%s29] sm:$0x1]
    %31 = vrot.lane.b32.xlu0 %v30, 88
    %v32 = vpop.permute.xlu0 %31
    %vm33 = vcmask 786112
    %34 = vst.msk [vmem:[#allocation0] sm:$0x1] %vm33, %v32
    %s35 = scalar_lea.vmem %s0, 10
    %v36 = vld [vmem:[%s35] sm:$0x1]
    %37 = vrot.lane.b32.xlu0 %v36, 80
    %v38 = vpop.permute.xlu0 %37
    %vm39 = vcmask 720512
    %40 = vst.msk [vmem:[#allocation0] sm:$0x1] %vm39, %v38
    %s41 = scalar_lea.vmem %s0, 9
    %v42 = vld [vmem:[%s41] sm:$0x1]
    %43 = vrot.lane.b32.xlu0 %v42, 72
    %v44 = vpop.permute.xlu0 %43
    %vm45 = vcmask 654912
    %46 = vst.msk [vmem:[#allocation0] sm:$0x1] %vm45, %v44
    %s47 = scalar_lea.vmem %s0, 8
    %v48 = vld [vmem:[%s47] sm:$0x1]
    %49 = vrot.lane.b32.xlu0 %v48, 64
    %v50 = vpop.permute.xlu0 %49
    %vm51 = vcmask 589312
    %52 = vst.msk [vmem:[#allocation0] sm:$0x1] %vm51, %v50
    %s53 = scalar_lea.vmem %s0, 7
    %v54 = vld [vmem:[%s53] sm:$0x1]
    %55 = vrot.lane.b32.xlu0 %v54, 56
    %v56 = vpop.permute.xlu0 %55
    %vm57 = vcmask 523712
    %58 = vst.msk [vmem:[#allocation0] sm:$0x1] %vm57, %v56
    %s59 = scalar_lea.vmem %s0, 6
    %v60 = vld [vmem:[%s59] sm:$0x1]
    %61 = vrot.lane.b32.xlu0 %v60, 48
    %v62 = vpop.permute.xlu0 %61
    %vm63 = vcmask 458112
    %64 = vst.msk [vmem:[#allocation0] sm:$0x1] %vm63, %v62
    %s65 = scalar_lea.vmem %s0, 5
    %v66 = vld [vmem:[%s65] sm:$0x1]
    %67 = vrot.lane.b32.xlu0 %v66, 40
    %v68 = vpop.permute.xlu0 %67
    %vm69 = vcmask 392512
    %70 = vst.msk [vmem:[#allocation0] sm:$0x1] %vm69, %v68
    %s71 = scalar_lea.vmem %s0, 4
    %v72 = vld [vmem:[%s71] sm:$0x1]
    %73 = vrot.lane.b32.xlu0 %v72, 32
    %v74 = vpop.permute.xlu0 %73
    %vm75 = vcmask 326912
    %76 = vst.msk [vmem:[#allocation0] sm:$0x1] %vm75, %v74
    %s77 = scalar_lea.vmem %s0, 3
    %v78 = vld [vmem:[%s77] sm:$0x1]
    %79 = vrot.lane.b32.xlu0 %v78, 24
    %v80 = vpop.permute.xlu0 %79
    %vm81 = vcmask 261312
    %82 = vst.msk [vmem:[#allocation0] sm:$0x1] %vm81, %v80
    %s83 = scalar_lea.vmem %s0, 2
    %v84 = vld [vmem:[%s83] sm:$0x1]
    %85 = vrot.lane.b32.xlu0 %v84, 16
    %v86 = vpop.permute.xlu0 %85
    %vm87 = vcmask 195712
    %88 = vst.msk [vmem:[#allocation0] sm:$0x1] %vm87, %v86
    %s89 = scalar_lea.vmem %s0, 1
    %v90 = vld [vmem:[%s89] sm:$0x1]
    %91 = vrot.lane.b32.xlu0 %v90, 8
    %v92 = vpop.permute.xlu0 %91
    %vm93 = vcmask 130112
    %94 = vst.msk [vmem:[#allocation0] sm:$0x1] %vm93, %v92
    %s96 = sshll.u32 1, 1
    %s97 = ssub.s32 %s96, 1
    %v99 = vld [vmem:[#allocation0] sm:%s97]
    %s100 = sshll.u32 1, 1
    %s101 = ssub.s32 %s100, 1
    %102 = vst [vmem:[%s1] sm:%s101] %v99

// kernel: basic_block_forward.5
$region0: #{basic_block_forward.5}
  #allocation0 [shape = 'u32[]', space=smem, size = 0x4, offset = 0x4, fixed_abs, tag = 'smem constant byte address 0x4 - core index']
  #allocation1 [shape = 'u32[144,128]{1,0:T(1,128)}', space=vmem, size = 0x12000, scoped, tag = 'internal scratch']
  %s0 = inlined_call_operand.vmem [shape: f32[8,576], index: 0, kind: input, shape index: {}]
  %s1 = inlined_call_operand.vmem [shape: f32[576,128], index: 1, kind: input, shape index: {}]
  %s2 = inlined_call_operand.vmem [shape: f32[8,128], index: 2, kind: output, shape index: {0}]
  %s3 = inlined_call_operand.vmem [shape: f32[2,128], index: 3, kind: output, shape index: {1}]
  %4 = xla_tuple %s2, %s3
  %s5 = sld [smem:[#allocation0]]
  $region30: #{basic_block_forward.5} parent=0
    _
  %s7 = ssub.s32 1, %s5
  %s8 = scalar_select 0, %s7, %s5
  // Predicated region
  $region2: #{basic_block_forward.5} parent=0 // pred_check
    _
  $region3: #{basic_block_forward.5} parent=0 // pred_check_branch
    %10 = sbr.rel (0) target = $region5
  $region4: #{basic_block_forward.5} parent=0 // pred_region
    _
  $region5: #{basic_block_forward.5} parent=0 // pred_fallthru
    _
  // Predicated region
  $region6: #{basic_block_forward.5} parent=0 // pred_check
    _
  $region7: #{basic_block_forward.5} parent=0 // pred_check_branch
    %12 = sbr.rel (0) target = $region9
  $region8: #{basic_block_forward.5} parent=0 // pred_region
    _
  $region9: #{basic_block_forward.5} parent=0 // pred_fallthru
    _
  %v13 = vld [vmem:[%s0] sm:$0xff]
  %v14 = vld [vmem:[%s0 + $0x8] sm:$0xff]
  %v15 = vld [vmem:[%s0 + $0x10] sm:$0xff]
  %v16 = vld [vmem:[%s0 + $0x18] sm:$0xff]
  %v17 = vld [vmem:[%s0 + $0x20] sm:$0xff]
  %v18 = vld [vmem:[%s1] sm:$0xff]
  %v19 = vld [vmem:[%s1 + $0x8] sm:$0xff]
  %v20 = vld [vmem:[%s1 + $0x10] sm:$0xff]
  %v21 = vld [vmem:[%s1 + $0x18] sm:$0xff]
  %v22 = vld [vmem:[%s1 + $0x20] sm:$0xff]
  %v23 = vld [vmem:[%s1 + $0x28] sm:$0xff]
  %v24 = vld [vmem:[%s1 + $0x30] sm:$0xff]
  %v25 = vld [vmem:[%s1 + $0x38] sm:$0xff]
  %v26 = vld [vmem:[%s1 + $0x40] sm:$0xff]
  %v27 = vld [vmem:[%s1 + $0x48] sm:$0xff]
  %v28 = vld [vmem:[%s1 + $0x50] sm:$0xff]
  %v29 = vld [vmem:[%s1 + $0x58] sm:$0xff]
  %v30 = vld [vmem:[%s1 + $0x60] sm:$0xff]
  %v31 = vld [vmem:[%s1 + $0x68] sm:$0xff]
  %v32 = vld [vmem:[%s1 + $0x70] sm:$0xff]
  %v33 = vld [vmem:[%s1 + $0x78] sm:$0xff]
  %v34 = vld [vmem:[%s1 + $0x80] sm:$0xff]
  %v35 = vld [vmem:[%s1 + $0x88] sm:$0xff]
  %v36 = vld [vmem:[%s1 + $0x90] sm:$0xff]
  %v37 = vld [vmem:[%s1 + $0x98] sm:$0xff]
  %v38 = vld [vmem:[%s1 + $0xa0] sm:$0xff]
  %v39 = vld [vmem:[%s1 + $0xa8] sm:$0xff]
  %v40 = vld [vmem:[%s1 + $0xb0] sm:$0xff]
  %v41 = vld [vmem:[%s1 + $0xb8] sm:$0xff]
  %v42 = vld [vmem:[%s1 + $0xc0] sm:$0xff]
  %v43 = vld [vmem:[%s1 + $0xc8] sm:$0xff]
  %v44 = vld [vmem:[%s1 + $0xd0] sm:$0xff]
  %v45 = vld [vmem:[%s1 + $0xd8] sm:$0xff]
  %v46 = vld [vmem:[%s1 + $0xe0] sm:$0xff]
  %v47 = vld [vmem:[%s1 + $0xe8] sm:$0xff]
  %v48 = vld [vmem:[%s1 + $0xf0] sm:$0xff]
  %v49 = vld [vmem:[%s1 + $0xf8] sm:$0xff]
  %v50 = vld [vmem:[%s1 + $0x100] sm:$0xff]
  %v51 = vld [vmem:[%s1 + $0x108] sm:$0xff]
  %v52 = vld [vmem:[%s1 + $0x110] sm:$0xff]
  %v53 = vld [vmem:[%s1 + $0x118] sm:$0xff]
  %v54 = vld [vmem:[%s1 + $0x120] sm:$0xff]
  %v55 = vld [vmem:[%s1 + $0x128] sm:$0xff]
  %v56 = vld [vmem:[%s1 + $0x130] sm:$0xff]
  %v57 = vld [vmem:[%s1 + $0x138] sm:$0xff]
  %v58 = vld [vmem:[%s1 + $0x140] sm:$0xff]
  %v59 = vld [vmem:[%s1 + $0x148] sm:$0xff]
  %v60 = vld [vmem:[%s1 + $0x150] sm:$0xff]
  %v61 = vld [vmem:[%s1 + $0x158] sm:$0xff]
  %v62 = vld [vmem:[%s1 + $0x160] sm:$0xff]
  %v63 = vld [vmem:[%s1 + $0x168] sm:$0xff]
  %v64 = vld [vmem:[%s1 + $0x170] sm:$0xff]
  %v65 = vld [vmem:[%s1 + $0x178] sm:$0xff]
  %v66 = vld [vmem:[%s1 + $0x180] sm:$0xff]
  %v67 = vld [vmem:[%s1 + $0x188] sm:$0xff]
  %v68 = vld [vmem:[%s1 + $0x190] sm:$0xff]
  %v69 = vld [vmem:[%s1 + $0x198] sm:$0xff]
  %v70 = vld [vmem:[%s1 + $0x1a0] sm:$0xff]
  %v71 = vld [vmem:[%s1 + $0x1a8] sm:$0xff]
  %v72 = vld [vmem:[%s1 + $0x1b0] sm:$0xff]
  %v73 = vld [vmem:[%s1 + $0x1b8] sm:$0xff]
  %v74 = vld [vmem:[%s1 + $0x1c0] sm:$0xff]
  %v75 = vld [vmem:[%s1 + $0x1c8] sm:$0xff]
  %v76 = vld [vmem:[%s1 + $0x1d0] sm:$0xff]
  %v77 = vld [vmem:[%s1 + $0x1d8] sm:$0xff]
  %v78 = vld [vmem:[%s1 + $0x1e0] sm:$0xff]
  %v79 = vld [vmem:[%s1 + $0x1e8] sm:$0xff]
  %v80 = vld [vmem:[%s1 + $0x1f0] sm:$0xff]
  %v81 = vld [vmem:[%s1 + $0x1f8] sm:$0xff]
  %v82 = vld [vmem:[%s1 + $0x200] sm:$0xff]
  %v83 = vld [vmem:[%s1 + $0x208] sm:$0xff]
  %v84 = vld [vmem:[%s1 + $0x210] sm:$0xff]
  %v85 = vld [vmem:[%s1 + $0x218] sm:$0xff]
  %v86 = vld [vmem:[%s1 + $0x220] sm:$0xff]
  %v87 = vld [vmem:[%s1 + $0x228] sm:$0xff]
  %v88 = vld [vmem:[%s1 + $0x230] sm:$0xff]
  %v89 = vld [vmem:[%s1 + $0x238] sm:$0xff]
  %vm90 = vcmask 523264
  %v92 = vsel %vm90, %v17, 0
  %94 = vmatprep.subr.mxu0 0.0
  %95 = vmatpush1.msra.mxu0 %v33
  %96 = vmatprep.subr.mxu0 0.0
  %97 = vmatpush1.msra.mxu0 %v32
  %98 = vmatprep.subr.mxu0 0.0
  %99 = vmatpush1.msra.mxu0 %v31
  %100 = vmatprep.subr.mxu0 0.0
  %101 = vmatpush1.msra.mxu0 %v30
  %102 = vmatprep.subr.mxu0 0.0
  %103 = vmatpush1.msra.mxu0 %v29
  %104 = vmatprep.subr.mxu0 0.0
  %105 = vmatpush1.msra.mxu0 %v28
  %106 = vmatprep.subr.mxu0 0.0
  %107 = vmatpush1.msra.mxu0 %v27
  %108 = vmatprep.subr.mxu0 0.0
  %109 = vmatpush1.msra.mxu0 %v26
  %110 = vmatprep.subr.mxu0 0.0
  %111 = vmatpush1.msra.mxu0 %v25
  %112 = vmatprep.subr.mxu0 0.0
  %113 = vmatpush1.msra.mxu0 %v24
  %114 = vmatprep.subr.mxu0 0.0
  %115 = vmatpush1.msra.mxu0 %v23
  %116 = vmatprep.subr.mxu0 0.0
  %117 = vmatpush1.msra.mxu0 %v22
  %118 = vmatprep.subr.mxu0 0.0
  %119 = vmatpush1.msra.mxu0 %v21
  %120 = vmatprep.subr.mxu0 0.0
  %121 = vmatpush1.msra.mxu0 %v20
  %122 = vmatprep.subr.mxu0 0.0
  %123 = vmatpush1.msra.mxu0 %v19
  %124 = vmatprep.subr.mxu0 0.0
  %125 = vmatpush1.msra.mxu0 %v18
  %126 = vmatprep.subr.mxu0 0.0
  %127 = vmatpush2.msra.mxu0 %v49
  %128 = vmatprep.subr.mxu0 0.0
  %129 = vmatpush2.msra.mxu0 %v48
  %130 = vmatprep.subr.mxu0 0.0
  %131 = vmatpush2.msra.mxu0 %v47
  %132 = vmatprep.subr.mxu0 0.0
  %133 = vmatpush2.msra.mxu0 %v46
  %134 = vmatprep.subr.mxu0 0.0
  %135 = vmatpush2.msra.mxu0 %v45
  %136 = vmatprep.subr.mxu0 0.0
  %137 = vmatpush2.msra.mxu0 %v44
  %138 = vmatprep.subr.mxu0 0.0
  %139 = vmatpush2.msra.mxu0 %v43
  %140 = vmatprep.subr.mxu0 0.0
  %141 = vmatpush2.msra.mxu0 %v42
  %142 = vmatprep.subr.mxu0 0.0
  %143 = vmatpush2.msra.mxu0 %v41
  %144 = vmatprep.subr.mxu0 0.0
  %145 = vmatpush2.msra.mxu0 %v40
  %146 = vmatprep.subr.mxu0 0.0
  %147 = vmatpush2.msra.mxu0 %v39
  %148 = vmatprep.subr.mxu0 0.0
  %149 = vmatpush2.msra.mxu0 %v38
  %150 = vmatprep.subr.mxu0 0.0
  %151 = vmatpush2.msra.mxu0 %v37
  %152 = vmatprep.subr.mxu0 0.0
  %153 = vmatpush2.msra.mxu0 %v36
  %154 = vmatprep.subr.mxu0 0.0
  %155 = vmatpush2.msra.mxu0 %v35
  %156 = vmatprep.subr.mxu0 0.0
  %157 = vmatpush2.msra.mxu0 %v34
  %158 = vmatprep.mubr.f32.mxu0 %v14
  %159 = vmatmul.mubr.f32.gmra.mxu0 %v13
  %v160 = vpop.f32.mrf.mxu0
  %v161 = vadd.f32 0.0, %v160
  %v162 = vpop.f32.mrf.mxu0
  %163 = vdwg.mxu0
  %164 = vmatprep.subr.mxu0 0.0
  %165 = vmatpush1.msra.mxu0 %v65
  %166 = vmatprep.subr.mxu0 0.0
  %167 = vmatpush1.msra.mxu0 %v64
  %168 = vmatprep.subr.mxu0 0.0
  %169 = vmatpush1.msra.mxu0 %v63
  %170 = vmatprep.subr.mxu0 0.0
  %171 = vmatpush1.msra.mxu0 %v62
  %172 = vmatprep.subr.mxu0 0.0
  %173 = vmatpush1.msra.mxu0 %v61
  %174 = vmatprep.subr.mxu0 0.0
  %175 = vmatpush1.msra.mxu0 %v60
  %176 = vmatprep.subr.mxu0 0.0
  %177 = vmatpush1.msra.mxu0 %v59
  %178 = vmatprep.subr.mxu0 0.0
  %179 = vmatpush1.msra.mxu0 %v58
  %180 = vmatprep.subr.mxu0 0.0
  %181 = vmatpush1.msra.mxu0 %v57
  %182 = vmatprep.subr.mxu0 0.0
  %183 = vmatpush1.msra.mxu0 %v56
  %184 = vmatprep.subr.mxu0 0.0
  %185 = vmatpush1.msra.mxu0 %v55
  %186 = vmatprep.subr.mxu0 0.0
  %187 = vmatpush1.msra.mxu0 %v54
  %188 = vmatprep.subr.mxu0 0.0
  %189 = vmatpush1.msra.mxu0 %v53
  %190 = vmatprep.subr.mxu0 0.0
  %191 = vmatpush1.msra.mxu0 %v52
  %192 = vmatprep.subr.mxu0 0.0
  %193 = vmatpush1.msra.mxu0 %v51
  %194 = vmatprep.subr.mxu0 0.0
  %195 = vmatpush1.msra.mxu0 %v50
  %196 = vmatprep.subr.mxu0 0.0
  %197 = vmatpush2.msra.mxu0 %v81
  %198 = vmatprep.subr.mxu0 0.0
  %199 = vmatpush2.msra.mxu0 %v80
  %200 = vmatprep.subr.mxu0 0.0
  %201 = vmatpush2.msra.mxu0 %v79
  %202 = vmatprep.subr.mxu0 0.0
  %203 = vmatpush2.msra.mxu0 %v78
  %204 = vmatprep.subr.mxu0 0.0
  %205 = vmatpush2.msra.mxu0 %v77
  %206 = vmatprep.subr.mxu0 0.0
  %207 = vmatpush2.msra.mxu0 %v76
  %208 = vmatprep.subr.mxu0 0.0
  %209 = vmatpush2.msra.mxu0 %v75
  %210 = vmatprep.subr.mxu0 0.0
  %211 = vmatpush2.msra.mxu0 %v74
  %212 = vmatprep.subr.mxu0 0.0
  %213 = vmatpush2.msra.mxu0 %v73
  %214 = vmatprep.subr.mxu0 0.0
  %215 = vmatpush2.msra.mxu0 %v72
  %216 = vmatprep.subr.mxu0 0.0
  %217 = vmatpush2.msra.mxu0 %v71
  %218 = vmatprep.subr.mxu0 0.0
  %219 = vmatpush2.msra.mxu0 %v70
  %220 = vmatprep.subr.mxu0 0.0
  %221 = vmatpush2.msra.mxu0 %v69
  %222 = vmatprep.subr.mxu0 0.0
  %223 = vmatpush2.msra.mxu0 %v68
  %224 = vmatprep.subr.mxu0 0.0
  %225 = vmatpush2.msra.mxu0 %v67
  %226 = vmatprep.subr.mxu0 0.0
  %227 = vmatpush2.msra.mxu0 %v66
  %228 = vmatprep.mubr.f32.mxu0 %v16
  %229 = vmatmul.mubr.f32.gmra.mxu0 %v15
  %v230 = vpop.f32.mrf.mxu0
  %v231 = vadd.f32 %v161, %v230
  %v232 = vpop.f32.mrf.mxu0
  %233 = vdwg.mxu0
  %234 = vmatprep.subr.mxu0 0.0
  %235 = vmatpush1.msra.mxu0 0.0
  %236 = vmatprep.subr.mxu0 0.0
  %237 = vmatpush1.msra.mxu0 0.0
  %238 = vmatprep.subr.mxu0 0.0
  %239 = vmatpush1.msra.mxu0 0.0
  %240 = vmatprep.subr.mxu0 0.0
  %241 = vmatpush1.msra.mxu0 0.0
  %242 = vmatprep.subr.mxu0 0.0
  %243 = vmatpush1.msra.mxu0 0.0
  %244 = vmatprep.subr.mxu0 0.0
  %245 = vmatpush1.msra.mxu0 0.0
  %246 = vmatprep.subr.mxu0 0.0
  %247 = vmatpush1.msra.mxu0 0.0
  %248 = vmatprep.subr.mxu0 0.0
  %249 = vmatpush1.msra.mxu0 0.0
  %250 = vmatprep.subr.mxu0 0.0
  %251 = vmatpush1.msra.mxu0 %v89
  %252 = vmatprep.subr.mxu0 0.0
  %253 = vmatpush1.msra.mxu0 %v88
  %254 = vmatprep.subr.mxu0 0.0
  %255 = vmatpush1.msra.mxu0 %v87
  %256 = vmatprep.subr.mxu0 0.0
  %257 = vmatpush1.msra.mxu0 %v86
  %258 = vmatprep.subr.mxu0 0.0
  %259 = vmatpush1.msra.mxu0 %v85
  %260 = vmatprep.subr.mxu0 0.0
  %261 = vmatpush1.msra.mxu0 %v84
  %262 = vmatprep.subr.mxu0 0.0
  %263 = vmatpush1.msra.mxu0 %v83
  %264 = vmatprep.subr.mxu0 0.0
  %265 = vmatpush1.msra.mxu0 %v82
  %266 = vmatprep.subr.mxu0 0.0
  %267 = vmatpush2.msra.mxu0 0.0
  %268 = vmatprep.subr.mxu0 0.0
  %269 = vmatpush2.msra.mxu0 0.0
  %270 = vmatprep.subr.mxu0 0.0
  %271 = vmatpush2.msra.mxu0 0.0
  %272 = vmatprep.subr.mxu0 0.0
  %273 = vmatpush2.msra.mxu0 0.0
  %274 = vmatprep.subr.mxu0 0.0
  %275 = vmatpush2.msra.mxu0 0.0
  %276 = vmatprep.subr.mxu0 0.0
  %277 = vmatpush2.msra.mxu0 0.0
  %278 = vmatprep.subr.mxu0 0.0
  %279 = vmatpush2.msra.mxu0 0.0
  %280 = vmatprep.subr.mxu0 0.0
  %281 = vmatpush2.msra.mxu0 0.0
  %282 = vmatprep.subr.mxu0 0.0
  %283 = vmatpush2.msra.mxu0 0.0
  %284 = vmatprep.subr.mxu0 0.0
  %285 = vmatpush2.msra.mxu0 0.0
  %286 = vmatprep.subr.mxu0 0.0
  %287 = vmatpush2.msra.mxu0 0.0
  %288 = vmatprep.subr.mxu0 0.0
  %289 = vmatpush2.msra.mxu0 0.0
  %290 = vmatprep.subr.mxu0 0.0
  %291 = vmatpush2.msra.mxu0 0.0
  %292 = vmatprep.subr.mxu0 0.0
  %293 = vmatpush2.msra.mxu0 0.0
  %294 = vmatprep.subr.mxu0 0.0
  %295 = vmatpush2.msra.mxu0 0.0
  %296 = vmatprep.subr.mxu0 0.0
  %297 = vmatpush2.msra.mxu0 0.0
  %298 = vmatprep.mubr.f32.mxu0 0.0
  %299 = vmatmul.mubr.f32.gmra.mxu0 %v92
  %v300 = vpop.f32.mrf.mxu0
  %v301 = vadd.f32 %v231, %v300
  %v302 = vpop.f32.mrf.mxu0
  %303 = vdwg.mxu0
  %304 = vst [vmem:[%s2] sm:$0xff] %v301
  %p305 = scmp.eq.s32.totalorder 0, 0
  // Predicated region
  $region10: #{basic_block_forward.5} parent=0 // pred_check
    %p306 = pneg %p305
  $region11: #{basic_block_forward.5} parent=0 // pred_check_branch
    %308 = sbr.rel (%p306) target = $region13
  $region12: #{basic_block_forward.5} parent=0 // pred_region
    %309 = vst [vmem:[%s3] sm:$0x3] 0.0
  $region13: #{basic_block_forward.5} parent=0 // pred_fallthru
    _
  %v310 = vrot.slane %v301, 4
  %v311 = vadd.f32 %v301, %v310
  %v312 = vrot.slane %v311, 2
  %v313 = vadd.f32 %v311, %v312
  %v314 = vrot.slane %v313, 1
  %v315 = vadd.f32 %v313, %v314
  %v316 = vmul.f32 %v301, %v301
  %v317 = vrot.slane %v316, 4
  %v318 = vadd.f32 %v316, %v317
  %v319 = vrot.slane %v318, 2
  %v320 = vadd.f32 %v318, %v319
  %v321 = vrot.slane %v320, 1
  %v322 = vadd.f32 %v320, %v321
  %v323 = vld [vmem:[%s3] sm:$0x3]
  %vm324 = vcmask 1040384
  %v325 = vsel %vm324, %v315, %v322
  %v326 = vadd.f32 %v323, %v325
  %327 = vst [vmem:[%s3] sm:$0x3] %v326
  // Predicated region
  $region14: #{basic_block_forward.5} parent=0 // pred_check
    _
  $region15: #{basic_block_forward.5} parent=0 // pred_check_branch
    %329 = sbr.rel (0) target = $region17
  $region16: #{basic_block_forward.5} parent=0 // pred_region
    _
  $region17: #{basic_block_forward.5} parent=0 // pred_fallthru
    _
  // Predicated region
  $region18: #{basic_block_forward.5} parent=0 // pred_check
    _
  $region19: #{basic_block_forward.5} parent=0 // pred_check_branch
    %331 = sbr.rel (0) target = $region21
  $region20: #{basic_block_forward.5} parent=0 // pred_region
    _
  $region21: #{basic_block_forward.5} parent=0 // pred_fallthru
    _
  // Predicated region
  $region22: #{basic_block_forward.5} parent=0 // pred_check
    _
  $region23: #{basic_block_forward.5} parent=0 // pred_check_branch
    %333 = sbr.rel (0) target = $region25
  $region24: #{basic_block_forward.5} parent=0 // pred_region
    _
  $region25: #{basic_block_forward.5} parent=0 // pred_fallthru
    _
  // Predicated region
  $region26: #{basic_block_forward.5} parent=0 // pred_check
    _
  $region27: #{basic_block_forward.5} parent=0 // pred_check_branch
    %335 = sbr.rel (0) target = $region29
  $region28: #{basic_block_forward.5} parent=0 // pred_region
    _
  $region29: #{basic_block_forward.5} parent=0 // pred_fallthru
    _

// kernel: basic_block_forward.6
$region0: #{basic_block_forward.6}
  #allocation0 [shape = 'u32[]', space=smem, size = 0x4, offset = 0x4, fixed_abs, tag = 'smem constant byte address 0x4 - core index']
  #allocation1 [shape = 'u32[144,128]{1,0:T(1,128)}', space=vmem, size = 0x12000, scoped, tag = 'internal scratch']
  %s0 = inlined_call_operand.vmem [shape: f32[8,128], index: 0, kind: input, shape index: {}]
  %s1 = inlined_call_operand.vmem [shape: f32[2,128], index: 1, kind: input, shape index: {}]
  %s2 = inlined_call_operand.vmem [shape: f32[8,128], index: 2, kind: output, shape index: {}]
  %s3 = sld [smem:[#allocation0]]
  $region18: #{basic_block_forward.6} parent=0
    _
  %s5 = ssub.s32 1, %s3
  %s6 = scalar_select 0, %s5, %s3
  // Predicated region
  $region2: #{basic_block_forward.6} parent=0 // pred_check
    _
  $region3: #{basic_block_forward.6} parent=0 // pred_check_branch
    %8 = sbr.rel (0) target = $region5
  $region4: #{basic_block_forward.6} parent=0 // pred_region
    _
  $region5: #{basic_block_forward.6} parent=0 // pred_fallthru
    _
  // Predicated region
  $region6: #{basic_block_forward.6} parent=0 // pred_check
    _
  $region7: #{basic_block_forward.6} parent=0 // pred_check_branch
    %10 = sbr.rel (0) target = $region9
  $region8: #{basic_block_forward.6} parent=0 // pred_region
    _
  $region9: #{basic_block_forward.6} parent=0 // pred_fallthru
    _
  %v11 = vld [vmem:[%s1] sm:$0x3]
  %v12 = vld [vmem:[%s0] sm:$0xff]
  %v13 = vlaneseq
  %v14 = vshrl.u32 %v13, 7
  %v15 = vsub.s32 0, %v14
  %v16 = vrot.slane %v11, %v15
  %v17 = vmul.f32 %v12, %v16
  %v18 = vlaneseq
  %v19 = vshrl.u32 %v18, 7
  %v20 = vsub.s32 1, %v19
  %v21 = vrot.slane %v11, %v20
  %v22 = vadd.f32 %v17, %v21
  %v23 = vmax.f32 %v22, 0.0
  %24 = vst [vmem:[%s2] sm:$0xff] %v23
  // Predicated region
  $region10: #{basic_block_forward.6} parent=0 // pred_check
    _
  $region11: #{basic_block_forward.6} parent=0 // pred_check_branch
    %26 = sbr.rel (0) target = $region13
  $region12: #{basic_block_forward.6} parent=0 // pred_region
    _
  $region13: #{basic_block_forward.6} parent=0 // pred_fallthru
    _
  // Predicated region
  $region14: #{basic_block_forward.6} parent=0 // pred_check
    _
  $region15: #{basic_block_forward.6} parent=0 // pred_check_branch
    %28 = sbr.rel (0) target = $region17
  $region16: #{basic_block_forward.6} parent=0 // pred_region
    _
  $region17: #{basic_block_forward.6} parent=0 // pred_fallthru
    _

// kernel: mul.18
$region0: #{mul.18}
  %s0 = inlined_call_operand.vmem [shape: f32[3,3,8,8], index: 0, kind: input, shape index: {}]
  %s1 = inlined_call_operand.vmem [shape: f32[72,8], index: 1, kind: output, shape index: {}]
  $region1: #{mul.18} parent=0
    #allocation0 [shape = 'u8[98304]{0}', space=vmem, size = 0x18000, scoped, tag = 'scoped mem for input reshape']
    %s3 = sshll.u32 1, 4
    %s4 = ssub.s32 %s3, 1
    %s5 = smul.addr 4, 23
    %s6 = scalar_lea.vmem %s0, %s5
    %v7 = vld [vmem:[%s6] sm:%s4]
    %s8 = scalar_lea.vmem [#allocation0], 184
    %9 = vst [vmem:[%s8] sm:%s4] %v7
    %s10 = smul.addr 4, 22
    %s11 = scalar_lea.vmem %s0, %s10
    %v12 = vld [vmem:[%s11] sm:%s4]
    %s13 = scalar_lea.vmem [#allocation0], 176
    %14 = vst [vmem:[%s13] sm:%s4] %v12
    %s15 = smul.addr 4, 21
    %s16 = scalar_lea.vmem %s0, %s15
    %v17 = vld [vmem:[%s16] sm:%s4]
    %s18 = scalar_lea.vmem [#allocation0], 168
    %19 = vst [vmem:[%s18] sm:%s4] %v17
    %s20 = smul.addr 4, 20
    %s21 = scalar_lea.vmem %s0, %s20
    %v22 = vld [vmem:[%s21] sm:%s4]
    %s23 = scalar_lea.vmem [#allocation0], 160
    %24 = vst [vmem:[%s23] sm:%s4] %v22
    %s25 = smul.addr 4, 19
    %s26 = scalar_lea.vmem %s0, %s25
    %v27 = vld [vmem:[%s26] sm:%s4]
    %s28 = scalar_lea.vmem [#allocation0], 152
    %29 = vst [vmem:[%s28] sm:%s4] %v27
    %s30 = smul.addr 4, 18
    %s31 = scalar_lea.vmem %s0, %s30
    %v32 = vld [vmem:[%s31] sm:%s4]
    %s33 = scalar_lea.vmem [#allocation0], 144
    %34 = vst [vmem:[%s33] sm:%s4] %v32
    %s35 = smul.addr 4, 17
    %s36 = scalar_lea.vmem %s0, %s35
    %v37 = vld [vmem:[%s36] sm:%s4]
    %s38 = scalar_lea.vmem [#allocation0], 136
    %39 = vst [vmem:[%s38] sm:%s4] %v37
    %s40 = smul.addr 4, 16
    %s41 = scalar_lea.vmem %s0, %s40
    %v42 = vld [vmem:[%s41] sm:%s4]
    %s43 = scalar_lea.vmem [#allocation0], 128
    %44 = vst [vmem:[%s43] sm:%s4] %v42
    %s45 = smul.addr 4, 15
    %s46 = scalar_lea.vmem %s0, %s45
    %v47 = vld [vmem:[%s46] sm:%s4]
    %s48 = scalar_lea.vmem [#allocation0], 120
    %49 = vst [vmem:[%s48] sm:%s4] %v47
    %s50 = smul.addr 4, 14
    %s51 = scalar_lea.vmem %s0, %s50
    %v52 = vld [vmem:[%s51] sm:%s4]
    %s53 = scalar_lea.vmem [#allocation0], 112
    %54 = vst [vmem:[%s53] sm:%s4] %v52
    %s55 = smul.addr 4, 13
    %s56 = scalar_lea.vmem %s0, %s55
    %v57 = vld [vmem:[%s56] sm:%s4]
    %s58 = scalar_lea.vmem [#allocation0], 104
    %59 = vst [vmem:[%s58] sm:%s4] %v57
    %s60 = smul.addr 4, 12
    %s61 = scalar_lea.vmem %s0, %s60
    %v62 = vld [vmem:[%s61] sm:%s4]
    %s63 = scalar_lea.vmem [#allocation0], 96
    %64 = vst [vmem:[%s63] sm:%s4] %v62
    %s65 = smul.addr 4, 11
    %s66 = scalar_lea.vmem %s0, %s65
    %v67 = vld [vmem:[%s66] sm:%s4]
    %s68 = scalar_lea.vmem [#allocation0], 88
    %69 = vst [vmem:[%s68] sm:%s4] %v67
    %s70 = smul.addr 4, 10
    %s71 = scalar_lea.vmem %s0, %s70
    %v72 = vld [vmem:[%s71] sm:%s4]
    %s73 = scalar_lea.vmem [#allocation0], 80
    %74 = vst [vmem:[%s73] sm:%s4] %v72
    %s75 = smul.addr 4, 9
    %s76 = scalar_lea.vmem %s0, %s75
    %v77 = vld [vmem:[%s76] sm:%s4]
    %s78 = scalar_lea.vmem [#allocation0], 72
    %79 = vst [vmem:[%s78] sm:%s4] %v77
    %s80 = smul.addr 4, 8
    %s81 = scalar_lea.vmem %s0, %s80
    %v82 = vld [vmem:[%s81] sm:%s4]
    %s83 = scalar_lea.vmem [#allocation0], 64
    %84 = vst [vmem:[%s83] sm:%s4] %v82
    %s85 = smul.addr 4, 7
    %s86 = scalar_lea.vmem %s0, %s85
    %v87 = vld [vmem:[%s86] sm:%s4]
    %s88 = scalar_lea.vmem [#allocation0], 56
    %89 = vst [vmem:[%s88] sm:%s4] %v87
    %s90 = smul.addr 4, 6
    %s91 = scalar_lea.vmem %s0, %s90
    %v92 = vld [vmem:[%s91] sm:%s4]
    %s93 = scalar_lea.vmem [#allocation0], 48
    %94 = vst [vmem:[%s93] sm:%s4] %v92
    %s95 = smul.addr 4, 5
    %s96 = scalar_lea.vmem %s0, %s95
    %v97 = vld [vmem:[%s96] sm:%s4]
    %s98 = scalar_lea.vmem [#allocation0], 40
    %99 = vst [vmem:[%s98] sm:%s4] %v97
    %s100 = smul.addr 4, 4
    %s101 = scalar_lea.vmem %s0, %s100
    %v102 = vld [vmem:[%s101] sm:%s4]
    %s103 = scalar_lea.vmem [#allocation0], 32
    %104 = vst [vmem:[%s103] sm:%s4] %v102
    %s105 = smul.addr 4, 3
    %s106 = scalar_lea.vmem %s0, %s105
    %v107 = vld [vmem:[%s106] sm:%s4]
    %s108 = scalar_lea.vmem [#allocation0], 24
    %109 = vst [vmem:[%s108] sm:%s4] %v107
    %s110 = smul.addr 4, 2
    %s111 = scalar_lea.vmem %s0, %s110
    %v112 = vld [vmem:[%s111] sm:%s4]
    %s113 = scalar_lea.vmem [#allocation0], 16
    %114 = vst [vmem:[%s113] sm:%s4] %v112
    %s115 = scalar_lea.vmem %s0, 4
    %v116 = vld [vmem:[%s115] sm:%s4]
    %s117 = scalar_lea.vmem [#allocation0], 8
    %118 = vst [vmem:[%s117] sm:%s4] %v116
    %v119 = vld [vmem:[%s0] sm:%s4]
    %120 = vst [vmem:[#allocation0] sm:%s4] %v119
    %v121 = vld [vmem:[#allocation0] ss:$24 sm:$0xf]
    %v122 = vld [vmem:[#allocation0] ss:$24 sm:$0xf0]
    %vm123 = vcmask 1047556
    %v124 = vsel %vm123, %v122, %v121
    %vm125 = vcmask 64512
    %126 = vst.msk [vmem:[%s1] sm:$0xff] %vm125, %v124
    %s127 = scalar_lea.vmem [#allocation0], 18
    %v128 = vld [vmem:[%s127] ss:$24 sm:$0xf]
    %s129 = scalar_lea.vmem [#allocation0], 18
    %v130 = vld [vmem:[%s129] ss:$24 sm:$0xf0]
    %vm131 = vcmask 1047556
    %v132 = vsel %vm131, %v130, %v128
    %133 = vrot.lane.b32.xlu0 %v132, 64
    %v134 = vpop.permute.xlu0 %133
    %vm135 = vcmask 589312
    %136 = vst.msk [vmem:[%s1] sm:$0xff] %vm135, %v134
    %s137 = scalar_lea.vmem [#allocation0], 17
    %v138 = vld [vmem:[%s137] ss:$24 sm:$0xf]
    %s139 = scalar_lea.vmem [#allocation0], 17
    %v140 = vld [vmem:[%s139] ss:$24 sm:$0xf0]
    %vm141 = vcmask 1047556
    %v142 = vsel %vm141, %v140, %v138
    %143 = vrot.lane.b32.xlu0 %v142, 56
    %v144 = vpop.permute.xlu0 %143
    %vm145 = vcmask 523712
    %146 = vst.msk [vmem:[%s1] sm:$0xff] %vm145, %v144
    %s147 = scalar_lea.vmem [#allocation0], 16
    %v148 = vld [vmem:[%s147] ss:$24 sm:$0xf]
    %s149 = scalar_lea.vmem [#allocation0], 16
    %v150 = vld [vmem:[%s149] ss:$24 sm:$0xf0]
    %vm151 = vcmask 1047556
    %v152 = vsel %vm151, %v150, %v148
    %153 = vrot.lane.b32.xlu0 %v152, 48
    %v154 = vpop.permute.xlu0 %153
    %vm155 = vcmask 458112
    %156 = vst.msk [vmem:[%s1] sm:$0xff] %vm155, %v154
    %s157 = scalar_lea.vmem [#allocation0], 10
    %v158 = vld [vmem:[%s157] ss:$24 sm:$0xf]
    %s159 = scalar_lea.vmem [#allocation0], 10
    %v160 = vld [vmem:[%s159] ss:$24 sm:$0xf0]
    %vm161 = vcmask 1047556
    %v162 = vsel %vm161, %v160, %v158
    %163 = vrot.lane.b32.xlu0 %v162, 40
    %v164 = vpop.permute.xlu0 %163
    %vm165 = vcmask 392512
    %166 = vst.msk [vmem:[%s1] sm:$0xff] %vm165, %v164
    %s167 = scalar_lea.vmem [#allocation0], 9
    %v168 = vld [vmem:[%s167] ss:$24 sm:$0xf]
    %s169 = scalar_lea.vmem [#allocation0], 9
    %v170 = vld [vmem:[%s169] ss:$24 sm:$0xf0]
    %vm171 = vcmask 1047556
    %v172 = vsel %vm171, %v170, %v168
    %173 = vrot.lane.b32.xlu0 %v172, 32
    %v174 = vpop.permute.xlu0 %173
    %vm175 = vcmask 326912
    %176 = vst.msk [vmem:[%s1] sm:$0xff] %vm175, %v174
    %s177 = scalar_lea.vmem [#allocation0], 8
    %v178 = vld [vmem:[%s177] ss:$24 sm:$0xf]
    %s179 = scalar_lea.vmem [#allocation0], 8
    %v180 = vld [vmem:[%s179] ss:$24 sm:$0xf0]
    %vm181 = vcmask 1047556
    %v182 = vsel %vm181, %v180, %v178
    %183 = vrot.lane.b32.xlu0 %v182, 24
    %v184 = vpop.permute.xlu0 %183
    %vm185 = vcmask 261312
    %186 = vst.msk [vmem:[%s1] sm:$0xff] %vm185, %v184
    %s187 = scalar_lea.vmem [#allocation0], 2
    %v188 = vld [vmem:[%s187] ss:$24 sm:$0xf]
    %s189 = scalar_lea.vmem [#allocation0], 2
    %v190 = vld [vmem:[%s189] ss:$24 sm:$0xf0]
    %vm191 = vcmask 1047556
    %v192 = vsel %vm191, %v190, %v188
    %193 = vrot.lane.b32.xlu0 %v192, 16
    %v194 = vpop.permute.xlu0 %193
    %vm195 = vcmask 195712
    %196 = vst.msk [vmem:[%s1] sm:$0xff] %vm195, %v194
    %s197 = scalar_lea.vmem [#allocation0], 1
    %v198 = vld [vmem:[%s197] ss:$24 sm:$0xf]
    %s199 = scalar_lea.vmem [#allocation0], 1
    %v200 = vld [vmem:[%s199] ss:$24 sm:$0xf0]
    %vm201 = vcmask 1047556
    %v202 = vsel %vm201, %v200, %v198
    %203 = vrot.lane.b32.xlu0 %v202, 8
    %v204 = vpop.permute.xlu0 %203
    %vm205 = vcmask 130112
    %206 = vst.msk [vmem:[%s1] sm:$0xff] %vm205, %v204

// kernel: basic_block_forward.7
$region0: #{basic_block_forward.7}
  #allocation0 [shape = 'u32[]', space=smem, size = 0x4, offset = 0x4, fixed_abs, tag = 'smem constant byte address 0x4 - core index']
  #allocation1 [shape = 'u32[144,128]{1,0:T(1,128)}', space=vmem, size = 0x12000, scoped, tag = 'internal scratch']
  %s0 = inlined_call_operand.vmem [shape: f32[8,1152], index: 0, kind: input, shape index: {}]
  %s1 = inlined_call_operand.vmem [shape: f32[1152,128], index: 1, kind: input, shape index: {}]
  %s2 = inlined_call_operand.vmem [shape: f32[8,128], index: 2, kind: output, shape index: {0}]
  %s3 = inlined_call_operand.vmem [shape: f32[2,128], index: 3, kind: output, shape index: {1}]
  %4 = xla_tuple %s2, %s3
  %s5 = sld [smem:[#allocation0]]
  $region30: #{basic_block_forward.7} parent=0
    _
  %s7 = ssub.s32 1, %s5
  %s8 = scalar_select 0, %s7, %s5
  // Predicated region
  $region2: #{basic_block_forward.7} parent=0 // pred_check
    _
  $region3: #{basic_block_forward.7} parent=0 // pred_check_branch
    %10 = sbr.rel (0) target = $region5
  $region4: #{basic_block_forward.7} parent=0 // pred_region
    _
  $region5: #{basic_block_forward.7} parent=0 // pred_fallthru
    _
  // Predicated region
  $region6: #{basic_block_forward.7} parent=0 // pred_check
    _
  $region7: #{basic_block_forward.7} parent=0 // pred_check_branch
    %12 = sbr.rel (0) target = $region9
  $region8: #{basic_block_forward.7} parent=0 // pred_region
    _
  $region9: #{basic_block_forward.7} parent=0 // pred_fallthru
    _
  %v13 = vld [vmem:[%s0] sm:$0xff]
  %v14 = vld [vmem:[%s0 + $0x8] sm:$0xff]
  %v15 = vld [vmem:[%s0 + $0x10] sm:$0xff]
  %v16 = vld [vmem:[%s0 + $0x18] sm:$0xff]
  %v17 = vld [vmem:[%s0 + $0x20] sm:$0xff]
  %v18 = vld [vmem:[%s0 + $0x28] sm:$0xff]
  %v19 = vld [vmem:[%s0 + $0x30] sm:$0xff]
  %v20 = vld [vmem:[%s0 + $0x38] sm:$0xff]
  %v21 = vld [vmem:[%s0 + $0x40] sm:$0xff]
  %v22 = vld [vmem:[%s1] sm:$0xff]
  %v23 = vld [vmem:[%s1 + $0x8] sm:$0xff]
  %v24 = vld [vmem:[%s1 + $0x10] sm:$0xff]
  %v25 = vld [vmem:[%s1 + $0x18] sm:$0xff]
  %v26 = vld [vmem:[%s1 + $0x20] sm:$0xff]
  %v27 = vld [vmem:[%s1 + $0x28] sm:$0xff]
  %v28 = vld [vmem:[%s1 + $0x30] sm:$0xff]
  %v29 = vld [vmem:[%s1 + $0x38] sm:$0xff]
  %v30 = vld [vmem:[%s1 + $0x40] sm:$0xff]
  %v31 = vld [vmem:[%s1 + $0x48] sm:$0xff]
  %v32 = vld [vmem:[%s1 + $0x50] sm:$0xff]
  %v33 = vld [vmem:[%s1 + $0x58] sm:$0xff]
  %v34 = vld [vmem:[%s1 + $0x60] sm:$0xff]
  %v35 = vld [vmem:[%s1 + $0x68] sm:$0xff]
  %v36 = vld [vmem:[%s1 + $0x70] sm:$0xff]
  %v37 = vld [vmem:[%s1 + $0x78] sm:$0xff]
  %v38 = vld [vmem:[%s1 + $0x80] sm:$0xff]
  %v39 = vld [vmem:[%s1 + $0x88] sm:$0xff]
  %v40 = vld [vmem:[%s1 + $0x90] sm:$0xff]
  %v41 = vld [vmem:[%s1 + $0x98] sm:$0xff]
  %v42 = vld [vmem:[%s1 + $0xa0] sm:$0xff]
  %v43 = vld [vmem:[%s1 + $0xa8] sm:$0xff]
  %v44 = vld [vmem:[%s1 + $0xb0] sm:$0xff]
  %v45 = vld [vmem:[%s1 + $0xb8] sm:$0xff]
  %v46 = vld [vmem:[%s1 + $0xc0] sm:$0xff]
  %v47 = vld [vmem:[%s1 + $0xc8] sm:$0xff]
  %v48 = vld [vmem:[%s1 + $0xd0] sm:$0xff]
  %v49 = vld [vmem:[%s1 + $0xd8] sm:$0xff]
  %v50 = vld [vmem:[%s1 + $0xe0] sm:$0xff]
  %v51 = vld [vmem:[%s1 + $0xe8] sm:$0xff]
  %v52 = vld [vmem:[%s1 + $0xf0] sm:$0xff]
  %v53 = vld [vmem:[%s1 + $0xf8] sm:$0xff]
  %v54 = vld [vmem:[%s1 + $0x100] sm:$0xff]
  %v55 = vld [vmem:[%s1 + $0x108] sm:$0xff]
  %v56 = vld [vmem:[%s1 + $0x110] sm:$0xff]
  %v57 = vld [vmem:[%s1 + $0x118] sm:$0xff]
  %v58 = vld [vmem:[%s1 + $0x120] sm:$0xff]
  %v59 = vld [vmem:[%s1 + $0x128] sm:$0xff]
  %v60 = vld [vmem:[%s1 + $0x130] sm:$0xff]
  %v61 = vld [vmem:[%s1 + $0x138] sm:$0xff]
  %v62 = vld [vmem:[%s1 + $0x140] sm:$0xff]
  %v63 = vld [vmem:[%s1 + $0x148] sm:$0xff]
  %v64 = vld [vmem:[%s1 + $0x150] sm:$0xff]
  %v65 = vld [vmem:[%s1 + $0x158] sm:$0xff]
  %v66 = vld [vmem:[%s1 + $0x160] sm:$0xff]
  %v67 = vld [vmem:[%s1 + $0x168] sm:$0xff]
  %v68 = vld [vmem:[%s1 + $0x170] sm:$0xff]
  %v69 = vld [vmem:[%s1 + $0x178] sm:$0xff]
  %v70 = vld [vmem:[%s1 + $0x180] sm:$0xff]
  %v71 = vld [vmem:[%s1 + $0x188] sm:$0xff]
  %v72 = vld [vmem:[%s1 + $0x190] sm:$0xff]
  %v73 = vld [vmem:[%s1 + $0x198] sm:$0xff]
  %v74 = vld [vmem:[%s1 + $0x1a0] sm:$0xff]
  %v75 = vld [vmem:[%s1 + $0x1a8] sm:$0xff]
  %v76 = vld [vmem:[%s1 + $0x1b0] sm:$0xff]
  %v77 = vld [vmem:[%s1 + $0x1b8] sm:$0xff]
  %v78 = vld [vmem:[%s1 + $0x1c0] sm:$0xff]
  %v79 = vld [vmem:[%s1 + $0x1c8] sm:$0xff]
  %v80 = vld [vmem:[%s1 + $0x1d0] sm:$0xff]
  %v81 = vld [vmem:[%s1 + $0x1d8] sm:$0xff]
  %v82 = vld [vmem:[%s1 + $0x1e0] sm:$0xff]
  %v83 = vld [vmem:[%s1 + $0x1e8] sm:$0xff]
  %v84 = vld [vmem:[%s1 + $0x1f0] sm:$0xff]
  %v85 = vld [vmem:[%s1 + $0x1f8] sm:$0xff]
  %v86 = vld [vmem:[%s1 + $0x200] sm:$0xff]
  %v87 = vld [vmem:[%s1 + $0x208] sm:$0xff]
  %v88 = vld [vmem:[%s1 + $0x210] sm:$0xff]
  %v89 = vld [vmem:[%s1 + $0x218] sm:$0xff]
  %v90 = vld [vmem:[%s1 + $0x220] sm:$0xff]
  %v91 = vld [vmem:[%s1 + $0x228] sm:$0xff]
  %v92 = vld [vmem:[%s1 + $0x230] sm:$0xff]
  %v93 = vld [vmem:[%s1 + $0x238] sm:$0xff]
  %v94 = vld [vmem:[%s1 + $0x240] sm:$0xff]
  %v95 = vld [vmem:[%s1 + $0x248] sm:$0xff]
  %v96 = vld [vmem:[%s1 + $0x250] sm:$0xff]
  %v97 = vld [vmem:[%s1 + $0x258] sm:$0xff]
  %v98 = vld [vmem:[%s1 + $0x260] sm:$0xff]
  %v99 = vld [vmem:[%s1 + $0x268] sm:$0xff]
  %v100 = vld [vmem:[%s1 + $0x270] sm:$0xff]
  %v101 = vld [vmem:[%s1 + $0x278] sm:$0xff]
  %v102 = vld [vmem:[%s1 + $0x280] sm:$0xff]
  %v103 = vld [vmem:[%s1 + $0x288] sm:$0xff]
  %v104 = vld [vmem:[%s1 + $0x290] sm:$0xff]
  %v105 = vld [vmem:[%s1 + $0x298] sm:$0xff]
  %v106 = vld [vmem:[%s1 + $0x2a0] sm:$0xff]
  %v107 = vld [vmem:[%s1 + $0x2a8] sm:$0xff]
  %v108 = vld [vmem:[%s1 + $0x2b0] sm:$0xff]
  %v109 = vld [vmem:[%s1 + $0x2b8] sm:$0xff]
  %v110 = vld [vmem:[%s1 + $0x2c0] sm:$0xff]
  %v111 = vld [vmem:[%s1 + $0x2c8] sm:$0xff]
  %v112 = vld [vmem:[%s1 + $0x2d0] sm:$0xff]
  %v113 = vld [vmem:[%s1 + $0x2d8] sm:$0xff]
  %v114 = vld [vmem:[%s1 + $0x2e0] sm:$0xff]
  %v115 = vld [vmem:[%s1 + $0x2e8] sm:$0xff]
  %v116 = vld [vmem:[%s1 + $0x2f0] sm:$0xff]
  %v117 = vld [vmem:[%s1 + $0x2f8] sm:$0xff]
  %v118 = vld [vmem:[%s1 + $0x300] sm:$0xff]
  %v119 = vld [vmem:[%s1 + $0x308] sm:$0xff]
  %v120 = vld [vmem:[%s1 + $0x310] sm:$0xff]
  %v121 = vld [vmem:[%s1 + $0x318] sm:$0xff]
  %v122 = vld [vmem:[%s1 + $0x320] sm:$0xff]
  %v123 = vld [vmem:[%s1 + $0x328] sm:$0xff]
  %v124 = vld [vmem:[%s1 + $0x330] sm:$0xff]
  %v125 = vld [vmem:[%s1 + $0x338] sm:$0xff]
  %v126 = vld [vmem:[%s1 + $0x340] sm:$0xff]
  %v127 = vld [vmem:[%s1 + $0x348] sm:$0xff]
  %v128 = vld [vmem:[%s1 + $0x350] sm:$0xff]
  %v129 = vld [vmem:[%s1 + $0x358] sm:$0xff]
  %v130 = vld [vmem:[%s1 + $0x360] sm:$0xff]
  %v131 = vld [vmem:[%s1 + $0x368] sm:$0xff]
  %v132 = vld [vmem:[%s1 + $0x370] sm:$0xff]
  %v133 = vld [vmem:[%s1 + $0x378] sm:$0xff]
  %v134 = vld [vmem:[%s1 + $0x380] sm:$0xff]
  %v135 = vld [vmem:[%s1 + $0x388] sm:$0xff]
  %v136 = vld [vmem:[%s1 + $0x390] sm:$0xff]
  %v137 = vld [vmem:[%s1 + $0x398] sm:$0xff]
  %v138 = vld [vmem:[%s1 + $0x3a0] sm:$0xff]
  %v139 = vld [vmem:[%s1 + $0x3a8] sm:$0xff]
  %v140 = vld [vmem:[%s1 + $0x3b0] sm:$0xff]
  %v141 = vld [vmem:[%s1 + $0x3b8] sm:$0xff]
  %v142 = vld [vmem:[%s1 + $0x3c0] sm:$0xff]
  %v143 = vld [vmem:[%s1 + $0x3c8] sm:$0xff]
  %v144 = vld [vmem:[%s1 + $0x3d0] sm:$0xff]
  %v145 = vld [vmem:[%s1 + $0x3d8] sm:$0xff]
  %v146 = vld [vmem:[%s1 + $0x3e0] sm:$0xff]
  %v147 = vld [vmem:[%s1 + $0x3e8] sm:$0xff]
  %v148 = vld [vmem:[%s1 + $0x3f0] sm:$0xff]
  %v149 = vld [vmem:[%s1 + $0x3f8] sm:$0xff]
  %v150 = vld [vmem:[%s1 + $0x400] sm:$0xff]
  %v151 = vld [vmem:[%s1 + $0x408] sm:$0xff]
  %v152 = vld [vmem:[%s1 + $0x410] sm:$0xff]
  %v153 = vld [vmem:[%s1 + $0x418] sm:$0xff]
  %v154 = vld [vmem:[%s1 + $0x420] sm:$0xff]
  %v155 = vld [vmem:[%s1 + $0x428] sm:$0xff]
  %v156 = vld [vmem:[%s1 + $0x430] sm:$0xff]
  %v157 = vld [vmem:[%s1 + $0x438] sm:$0xff]
  %v158 = vld [vmem:[%s1 + $0x440] sm:$0xff]
  %v159 = vld [vmem:[%s1 + $0x448] sm:$0xff]
  %v160 = vld [vmem:[%s1 + $0x450] sm:$0xff]
  %v161 = vld [vmem:[%s1 + $0x458] sm:$0xff]
  %v162 = vld [vmem:[%s1 + $0x460] sm:$0xff]
  %v163 = vld [vmem:[%s1 + $0x468] sm:$0xff]
  %v164 = vld [vmem:[%s1 + $0x470] sm:$0xff]
  %v165 = vld [vmem:[%s1 + $0x478] sm:$0xff]
  %166 = vmatprep.subr.mxu0 0.0
  %167 = vmatpush1.msra.mxu0 %v37
  %168 = vmatprep.subr.mxu0 0.0
  %169 = vmatpush1.msra.mxu0 %v36
  %170 = vmatprep.subr.mxu0 0.0
  %171 = vmatpush1.msra.mxu0 %v35
  %172 = vmatprep.subr.mxu0 0.0
  %173 = vmatpush1.msra.mxu0 %v34
  %174 = vmatprep.subr.mxu0 0.0
  %175 = vmatpush1.msra.mxu0 %v33
  %176 = vmatprep.subr.mxu0 0.0
  %177 = vmatpush1.msra.mxu0 %v32
  %178 = vmatprep.subr.mxu0 0.0
  %179 = vmatpush1.msra.mxu0 %v31
  %180 = vmatprep.subr.mxu0 0.0
  %181 = vmatpush1.msra.mxu0 %v30
  %182 = vmatprep.subr.mxu0 0.0
  %183 = vmatpush1.msra.mxu0 %v29
  %184 = vmatprep.subr.mxu0 0.0
  %185 = vmatpush1.msra.mxu0 %v28
  %186 = vmatprep.subr.mxu0 0.0
  %187 = vmatpush1.msra.mxu0 %v27
  %188 = vmatprep.subr.mxu0 0.0
  %189 = vmatpush1.msra.mxu0 %v26
  %190 = vmatprep.subr.mxu0 0.0
  %191 = vmatpush1.msra.mxu0 %v25
  %192 = vmatprep.subr.mxu0 0.0
  %193 = vmatpush1.msra.mxu0 %v24
  %194 = vmatprep.subr.mxu0 0.0
  %195 = vmatpush1.msra.mxu0 %v23
  %196 = vmatprep.subr.mxu0 0.0
  %197 = vmatpush1.msra.mxu0 %v22
  %198 = vmatprep.subr.mxu0 0.0
  %199 = vmatpush2.msra.mxu0 %v53
  %200 = vmatprep.subr.mxu0 0.0
  %201 = vmatpush2.msra.mxu0 %v52
  %202 = vmatprep.subr.mxu0 0.0
  %203 = vmatpush2.msra.mxu0 %v51
  %204 = vmatprep.subr.mxu0 0.0
  %205 = vmatpush2.msra.mxu0 %v50
  %206 = vmatprep.subr.mxu0 0.0
  %207 = vmatpush2.msra.mxu0 %v49
  %208 = vmatprep.subr.mxu0 0.0
  %209 = vmatpush2.msra.mxu0 %v48
  %210 = vmatprep.subr.mxu0 0.0
  %211 = vmatpush2.msra.mxu0 %v47
  %212 = vmatprep.subr.mxu0 0.0
  %213 = vmatpush2.msra.mxu0 %v46
  %214 = vmatprep.subr.mxu0 0.0
  %215 = vmatpush2.msra.mxu0 %v45
  %216 = vmatprep.subr.mxu0 0.0
  %217 = vmatpush2.msra.mxu0 %v44
  %218 = vmatprep.subr.mxu0 0.0
  %219 = vmatpush2.msra.mxu0 %v43
  %220 = vmatprep.subr.mxu0 0.0
  %221 = vmatpush2.msra.mxu0 %v42
  %222 = vmatprep.subr.mxu0 0.0
  %223 = vmatpush2.msra.mxu0 %v41
  %224 = vmatprep.subr.mxu0 0.0
  %225 = vmatpush2.msra.mxu0 %v40
  %226 = vmatprep.subr.mxu0 0.0
  %227 = vmatpush2.msra.mxu0 %v39
  %228 = vmatprep.subr.mxu0 0.0
  %229 = vmatpush2.msra.mxu0 %v38
  %230 = vmatprep.mubr.f32.mxu0 %v14
  %231 = vmatmul.mubr.f32.gmra.mxu0 %v13
  %v232 = vpop.f32.mrf.mxu0
  %v233 = vadd.f32 0.0, %v232
  %v234 = vpop.f32.mrf.mxu0
  %235 = vdwg.mxu0
  %236 = vmatprep.subr.mxu0 0.0
  %237 = vmatpush1.msra.mxu0 %v69
  %238 = vmatprep.subr.mxu0 0.0
  %239 = vmatpush1.msra.mxu0 %v68
  %240 = vmatprep.subr.mxu0 0.0
  %241 = vmatpush1.msra.mxu0 %v67
  %242 = vmatprep.subr.mxu0 0.0
  %243 = vmatpush1.msra.mxu0 %v66
  %244 = vmatprep.subr.mxu0 0.0
  %245 = vmatpush1.msra.mxu0 %v65
  %246 = vmatprep.subr.mxu0 0.0
  %247 = vmatpush1.msra.mxu0 %v64
  %248 = vmatprep.subr.mxu0 0.0
  %249 = vmatpush1.msra.mxu0 %v63
  %250 = vmatprep.subr.mxu0 0.0
  %251 = vmatpush1.msra.mxu0 %v62
  %252 = vmatprep.subr.mxu0 0.0
  %253 = vmatpush1.msra.mxu0 %v61
  %254 = vmatprep.subr.mxu0 0.0
  %255 = vmatpush1.msra.mxu0 %v60
  %256 = vmatprep.subr.mxu0 0.0
  %257 = vmatpush1.msra.mxu0 %v59
  %258 = vmatprep.subr.mxu0 0.0
  %259 = vmatpush1.msra.mxu0 %v58
  %260 = vmatprep.subr.mxu0 0.0
  %261 = vmatpush1.msra.mxu0 %v57
  %262 = vmatprep.subr.mxu0 0.0
  %263 = vmatpush1.msra.mxu0 %v56
  %264 = vmatprep.subr.mxu0 0.0
  %265 = vmatpush1.msra.mxu0 %v55
  %266 = vmatprep.subr.mxu0 0.0
  %267 = vmatpush1.msra.mxu0 %v54
  %268 = vmatprep.subr.mxu0 0.0
  %269 = vmatpush2.msra.mxu0 %v85
  %270 = vmatprep.subr.mxu0 0.0
  %271 = vmatpush2.msra.mxu0 %v84
  %272 = vmatprep.subr.mxu0 0.0
  %273 = vmatpush2.msra.mxu0 %v83
  %274 = vmatprep.subr.mxu0 0.0
  %275 = vmatpush2.msra.mxu0 %v82
  %276 = vmatprep.subr.mxu0 0.0
  %277 = vmatpush2.msra.mxu0 %v81
  %278 = vmatprep.subr.mxu0 0.0
  %279 = vmatpush2.msra.mxu0 %v80
  %280 = vmatprep.subr.mxu0 0.0
  %281 = vmatpush2.msra.mxu0 %v79
  %282 = vmatprep.subr.mxu0 0.0
  %283 = vmatpush2.msra.mxu0 %v78
  %284 = vmatprep.subr.mxu0 0.0
  %285 = vmatpush2.msra.mxu0 %v77
  %286 = vmatprep.subr.mxu0 0.0
  %287 = vmatpush2.msra.mxu0 %v76
  %288 = vmatprep.subr.mxu0 0.0
  %289 = vmatpush2.msra.mxu0 %v75
  %290 = vmatprep.subr.mxu0 0.0
  %291 = vmatpush2.msra.mxu0 %v74
  %292 = vmatprep.subr.mxu0 0.0
  %293 = vmatpush2.msra.mxu0 %v73
  %294 = vmatprep.subr.mxu0 0.0
  %295 = vmatpush2.msra.mxu0 %v72
  %296 = vmatprep.subr.mxu0 0.0
  %297 = vmatpush2.msra.mxu0 %v71
  %298 = vmatprep.subr.mxu0 0.0
  %299 = vmatpush2.msra.mxu0 %v70
  %300 = vmatprep.mubr.f32.mxu0 %v16
  %301 = vmatmul.mubr.f32.gmra.mxu0 %v15
  %v302 = vpop.f32.mrf.mxu0
  %v303 = vadd.f32 %v233, %v302
  %v304 = vpop.f32.mrf.mxu0
  %305 = vdwg.mxu0
  %306 = vmatprep.subr.mxu0 0.0
  %307 = vmatpush1.msra.mxu0 %v101
  %308 = vmatprep.subr.mxu0 0.0
  %309 = vmatpush1.msra.mxu0 %v100
  %310 = vmatprep.subr.mxu0 0.0
  %311 = vmatpush1.msra.mxu0 %v99
  %312 = vmatprep.subr.mxu0 0.0
  %313 = vmatpush1.msra.mxu0 %v98
  %314 = vmatprep.subr.mxu0 0.0
  %315 = vmatpush1.msra.mxu0 %v97
  %316 = vmatprep.subr.mxu0 0.0
  %317 = vmatpush1.msra.mxu0 %v96
  %318 = vmatprep.subr.mxu0 0.0
  %319 = vmatpush1.msra.mxu0 %v95
  %320 = vmatprep.subr.mxu0 0.0
  %321 = vmatpush1.msra.mxu0 %v94
  %322 = vmatprep.subr.mxu0 0.0
  %323 = vmatpush1.msra.mxu0 %v93
  %324 = vmatprep.subr.mxu0 0.0
  %325 = vmatpush1.msra.mxu0 %v92
  %326 = vmatprep.subr.mxu0 0.0
  %327 = vmatpush1.msra.mxu0 %v91
  %328 = vmatprep.subr.mxu0 0.0
  %329 = vmatpush1.msra.mxu0 %v90
  %330 = vmatprep.subr.mxu0 0.0
  %331 = vmatpush1.msra.mxu0 %v89
  %332 = vmatprep.subr.mxu0 0.0
  %333 = vmatpush1.msra.mxu0 %v88
  %334 = vmatprep.subr.mxu0 0.0
  %335 = vmatpush1.msra.mxu0 %v87
  %336 = vmatprep.subr.mxu0 0.0
  %337 = vmatpush1.msra.mxu0 %v86
  %338 = vmatprep.subr.mxu0 0.0
  %339 = vmatpush2.msra.mxu0 %v117
  %340 = vmatprep.subr.mxu0 0.0
  %341 = vmatpush2.msra.mxu0 %v116
  %342 = vmatprep.subr.mxu0 0.0
  %343 = vmatpush2.msra.mxu0 %v115
  %344 = vmatprep.subr.mxu0 0.0
  %345 = vmatpush2.msra.mxu0 %v114
  %346 = vmatprep.subr.mxu0 0.0
  %347 = vmatpush2.msra.mxu0 %v113
  %348 = vmatprep.subr.mxu0 0.0
  %349 = vmatpush2.msra.mxu0 %v112
  %350 = vmatprep.subr.mxu0 0.0
  %351 = vmatpush2.msra.mxu0 %v111
  %352 = vmatprep.subr.mxu0 0.0
  %353 = vmatpush2.msra.mxu0 %v110
  %354 = vmatprep.subr.mxu0 0.0
  %355 = vmatpush2.msra.mxu0 %v109
  %356 = vmatprep.subr.mxu0 0.0
  %357 = vmatpush2.msra.mxu0 %v108
  %358 = vmatprep.subr.mxu0 0.0
  %359 = vmatpush2.msra.mxu0 %v107
  %360 = vmatprep.subr.mxu0 0.0
  %361 = vmatpush2.msra.mxu0 %v106
  %362 = vmatprep.subr.mxu0 0.0
  %363 = vmatpush2.msra.mxu0 %v105
  %364 = vmatprep.subr.mxu0 0.0
  %365 = vmatpush2.msra.mxu0 %v104
  %366 = vmatprep.subr.mxu0 0.0
  %367 = vmatpush2.msra.mxu0 %v103
  %368 = vmatprep.subr.mxu0 0.0
  %369 = vmatpush2.msra.mxu0 %v102
  %370 = vmatprep.mubr.f32.mxu0 %v18
  %371 = vmatmul.mubr.f32.gmra.mxu0 %v17
  %v372 = vpop.f32.mrf.mxu0
  %v373 = vadd.f32 %v303, %v372
  %v374 = vpop.f32.mrf.mxu0
  %375 = vdwg.mxu0
  %376 = vmatprep.subr.mxu0 0.0
  %377 = vmatpush1.msra.mxu0 %v133
  %378 = vmatprep.subr.mxu0 0.0
  %379 = vmatpush1.msra.mxu0 %v132
  %380 = vmatprep.subr.mxu0 0.0
  %381 = vmatpush1.msra.mxu0 %v131
  %382 = vmatprep.subr.mxu0 0.0
  %383 = vmatpush1.msra.mxu0 %v130
  %384 = vmatprep.subr.mxu0 0.0
  %385 = vmatpush1.msra.mxu0 %v129
  %386 = vmatprep.subr.mxu0 0.0
  %387 = vmatpush1.msra.mxu0 %v128
  %388 = vmatprep.subr.mxu0 0.0
  %389 = vmatpush1.msra.mxu0 %v127
  %390 = vmatprep.subr.mxu0 0.0
  %391 = vmatpush1.msra.mxu0 %v126
  %392 = vmatprep.subr.mxu0 0.0
  %393 = vmatpush1.msra.mxu0 %v125
  %394 = vmatprep.subr.mxu0 0.0
  %395 = vmatpush1.msra.mxu0 %v124
  %396 = vmatprep.subr.mxu0 0.0
  %397 = vmatpush1.msra.mxu0 %v123
  %398 = vmatprep.subr.mxu0 0.0
  %399 = vmatpush1.msra.mxu0 %v122
  %400 = vmatprep.subr.mxu0 0.0
  %401 = vmatpush1.msra.mxu0 %v121
  %402 = vmatprep.subr.mxu0 0.0
  %403 = vmatpush1.msra.mxu0 %v120
  %404 = vmatprep.subr.mxu0 0.0
  %405 = vmatpush1.msra.mxu0 %v119
  %406 = vmatprep.subr.mxu0 0.0
  %407 = vmatpush1.msra.mxu0 %v118
  %408 = vmatprep.subr.mxu0 0.0
  %409 = vmatpush2.msra.mxu0 %v149
  %410 = vmatprep.subr.mxu0 0.0
  %411 = vmatpush2.msra.mxu0 %v148
  %412 = vmatprep.subr.mxu0 0.0
  %413 = vmatpush2.msra.mxu0 %v147
  %414 = vmatprep.subr.mxu0 0.0
  %415 = vmatpush2.msra.mxu0 %v146
  %416 = vmatprep.subr.mxu0 0.0
  %417 = vmatpush2.msra.mxu0 %v145
  %418 = vmatprep.subr.mxu0 0.0
  %419 = vmatpush2.msra.mxu0 %v144
  %420 = vmatprep.subr.mxu0 0.0
  %421 = vmatpush2.msra.mxu0 %v143
  %422 = vmatprep.subr.mxu0 0.0
  %423 = vmatpush2.msra.mxu0 %v142
  %424 = vmatprep.subr.mxu0 0.0
  %425 = vmatpush2.msra.mxu0 %v141
  %426 = vmatprep.subr.mxu0 0.0
  %427 = vmatpush2.msra.mxu0 %v140
  %428 = vmatprep.subr.mxu0 0.0
  %429 = vmatpush2.msra.mxu0 %v139
  %430 = vmatprep.subr.mxu0 0.0
  %431 = vmatpush2.msra.mxu0 %v138
  %432 = vmatprep.subr.mxu0 0.0
  %433 = vmatpush2.msra.mxu0 %v137
  %434 = vmatprep.subr.mxu0 0.0
  %435 = vmatpush2.msra.mxu0 %v136
  %436 = vmatprep.subr.mxu0 0.0
  %437 = vmatpush2.msra.mxu0 %v135
  %438 = vmatprep.subr.mxu0 0.0
  %439 = vmatpush2.msra.mxu0 %v134
  %440 = vmatprep.mubr.f32.mxu0 %v20
  %441 = vmatmul.mubr.f32.gmra.mxu0 %v19
  %v442 = vpop.f32.mrf.mxu0
  %v443 = vadd.f32 %v373, %v442
  %v444 = vpop.f32.mrf.mxu0
  %445 = vdwg.mxu0
  %446 = vmatprep.subr.mxu0 0.0
  %447 = vmatpush1.msra.mxu0 %v165
  %448 = vmatprep.subr.mxu0 0.0
  %449 = vmatpush1.msra.mxu0 %v164
  %450 = vmatprep.subr.mxu0 0.0
  %451 = vmatpush1.msra.mxu0 %v163
  %452 = vmatprep.subr.mxu0 0.0
  %453 = vmatpush1.msra.mxu0 %v162
  %454 = vmatprep.subr.mxu0 0.0
  %455 = vmatpush1.msra.mxu0 %v161
  %456 = vmatprep.subr.mxu0 0.0
  %457 = vmatpush1.msra.mxu0 %v160
  %458 = vmatprep.subr.mxu0 0.0
  %459 = vmatpush1.msra.mxu0 %v159
  %460 = vmatprep.subr.mxu0 0.0
  %461 = vmatpush1.msra.mxu0 %v158
  %462 = vmatprep.subr.mxu0 0.0
  %463 = vmatpush1.msra.mxu0 %v157
  %464 = vmatprep.subr.mxu0 0.0
  %465 = vmatpush1.msra.mxu0 %v156
  %466 = vmatprep.subr.mxu0 0.0
  %467 = vmatpush1.msra.mxu0 %v155
  %468 = vmatprep.subr.mxu0 0.0
  %469 = vmatpush1.msra.mxu0 %v154
  %470 = vmatprep.subr.mxu0 0.0
  %471 = vmatpush1.msra.mxu0 %v153
  %472 = vmatprep.subr.mxu0 0.0
  %473 = vmatpush1.msra.mxu0 %v152
  %474 = vmatprep.subr.mxu0 0.0
  %475 = vmatpush1.msra.mxu0 %v151
  %476 = vmatprep.subr.mxu0 0.0
  %477 = vmatpush1.msra.mxu0 %v150
  %478 = vmatprep.subr.mxu0 0.0
  %479 = vmatpush2.msra.mxu0 0.0
  %480 = vmatprep.subr.mxu0 0.0
  %481 = vmatpush2.msra.mxu0 0.0
  %482 = vmatprep.subr.mxu0 0.0
  %483 = vmatpush2.msra.mxu0 0.0
  %484 = vmatprep.subr.mxu0 0.0
  %485 = vmatpush2.msra.mxu0 0.0
  %486 = vmatprep.subr.mxu0 0.0
  %487 = vmatpush2.msra.mxu0 0.0
  %488 = vmatprep.subr.mxu0 0.0
  %489 = vmatpush2.msra.mxu0 0.0
  %490 = vmatprep.subr.mxu0 0.0
  %491 = vmatpush2.msra.mxu0 0.0
  %492 = vmatprep.subr.mxu0 0.0
  %493 = vmatpush2.msra.mxu0 0.0
  %494 = vmatprep.subr.mxu0 0.0
  %495 = vmatpush2.msra.mxu0 0.0
  %496 = vmatprep.subr.mxu0 0.0
  %497 = vmatpush2.msra.mxu0 0.0
  %498 = vmatprep.subr.mxu0 0.0
  %499 = vmatpush2.msra.mxu0 0.0
  %500 = vmatprep.subr.mxu0 0.0
  %501 = vmatpush2.msra.mxu0 0.0
  %502 = vmatprep.subr.mxu0 0.0
  %503 = vmatpush2.msra.mxu0 0.0
  %504 = vmatprep.subr.mxu0 0.0
  %505 = vmatpush2.msra.mxu0 0.0
  %506 = vmatprep.subr.mxu0 0.0
  %507 = vmatpush2.msra.mxu0 0.0
  %508 = vmatprep.subr.mxu0 0.0
  %509 = vmatpush2.msra.mxu0 0.0
  %510 = vmatprep.mubr.f32.mxu0 0.0
  %511 = vmatmul.mubr.f32.gmra.mxu0 %v21
  %v512 = vpop.f32.mrf.mxu0
  %v513 = vadd.f32 %v443, %v512
  %v514 = vpop.f32.mrf.mxu0
  %515 = vdwg.mxu0
  %516 = vst [vmem:[%s2] sm:$0xff] %v513
  %p517 = scmp.eq.s32.totalorder 0, 0
  // Predicated region
  $region10: #{basic_block_forward.7} parent=0 // pred_check
    %p518 = pneg %p517
  $region11: #{basic_block_forward.7} parent=0 // pred_check_branch
    %520 = sbr.rel (%p518) target = $region13
  $region12: #{basic_block_forward.7} parent=0 // pred_region
    %521 = vst [vmem:[%s3] sm:$0x3] 0.0
  $region13: #{basic_block_forward.7} parent=0 // pred_fallthru
    _
  %v522 = vrot.slane %v513, 4
  %v523 = vadd.f32 %v513, %v522
  %v524 = vrot.slane %v523, 2
  %v525 = vadd.f32 %v523, %v524
  %v526 = vrot.slane %v525, 1
  %v527 = vadd.f32 %v525, %v526
  %v528 = vmul.f32 %v513, %v513
  %v529 = vrot.slane %v528, 4
  %v530 = vadd.f32 %v528, %v529
  %v531 = vrot.slane %v530, 2
  %v532 = vadd.f32 %v530, %v531
  %v533 = vrot.slane %v532, 1
  %v534 = vadd.f32 %v532, %v533
  %v535 = vld [vmem:[%s3] sm:$0x3]
  %vm536 = vcmask 1040384
  %v537 = vsel %vm536, %v527, %v534
  %v538 = vadd.f32 %v535, %v537
  %539 = vst [vmem:[%s3] sm:$0x3] %v538
  // Predicated region
  $region14: #{basic_block_forward.7} parent=0 // pred_check
    _
  $region15: #{basic_block_forward.7} parent=0 // pred_check_branch
    %541 = sbr.rel (0) target = $region17
  $region16: #{basic_block_forward.7} parent=0 // pred_region
    _
  $region17: #{basic_block_forward.7} parent=0 // pred_fallthru
    _
  // Predicated region
  $region18: #{basic_block_forward.7} parent=0 // pred_check
    _
  $region19: #{basic_block_forward.7} parent=0 // pred_check_branch
    %543 = sbr.rel (0) target = $region21
  $region20: #{basic_block_forward.7} parent=0 // pred_region
    _
  $region21: #{basic_block_forward.7} parent=0 // pred_fallthru
    _
  // Predicated region
  $region22: #{basic_block_forward.7} parent=0 // pred_check
    _
  $region23: #{basic_block_forward.7} parent=0 // pred_check_branch
    %545 = sbr.rel (0) target = $region25
  $region24: #{basic_block_forward.7} parent=0 // pred_region
    _
  $region25: #{basic_block_forward.7} parent=0 // pred_fallthru
    _
  // Predicated region
  $region26: #{basic_block_forward.7} parent=0 // pred_check
    _
  $region27: #{basic_block_forward.7} parent=0 // pred_check_branch
    %547 = sbr.rel (0) target = $region29
  $region28: #{basic_block_forward.7} parent=0 // pred_region
    _
  $region29: #{basic_block_forward.7} parent=0 // pred_fallthru
    _

// kernel: basic_block_forward.8
$region0: #{basic_block_forward.8}
  #allocation0 [shape = 'u32[]', space=smem, size = 0x4, offset = 0x4, fixed_abs, tag = 'smem constant byte address 0x4 - core index']
  #allocation1 [shape = 'u32[144,128]{1,0:T(1,128)}', space=vmem, size = 0x12000, scoped, tag = 'internal scratch']
  %s0 = inlined_call_operand.vmem [shape: f32[8,64], index: 0, kind: input, shape index: {}]
  %s1 = inlined_call_operand.vmem [shape: f32[64,128], index: 1, kind: input, shape index: {}]
  %s2 = inlined_call_operand.vmem [shape: f32[8,128], index: 2, kind: output, shape index: {0}]
  %s3 = inlined_call_operand.vmem [shape: f32[2,128], index: 3, kind: output, shape index: {1}]
  %4 = xla_tuple %s2, %s3
  %s5 = sld [smem:[#allocation0]]
  $region30: #{basic_block_forward.8} parent=0
    _
  %s7 = ssub.s32 1, %s5
  %s8 = scalar_select 0, %s7, %s5
  // Predicated region
  $region2: #{basic_block_forward.8} parent=0 // pred_check
    _
  $region3: #{basic_block_forward.8} parent=0 // pred_check_branch
    %10 = sbr.rel (0) target = $region5
  $region4: #{basic_block_forward.8} parent=0 // pred_region
    _
  $region5: #{basic_block_forward.8} parent=0 // pred_fallthru
    _
  // Predicated region
  $region6: #{basic_block_forward.8} parent=0 // pred_check
    _
  $region7: #{basic_block_forward.8} parent=0 // pred_check_branch
    %12 = sbr.rel (0) target = $region9
  $region8: #{basic_block_forward.8} parent=0 // pred_region
    _
  $region9: #{basic_block_forward.8} parent=0 // pred_fallthru
    _
  %v13 = vld [vmem:[%s0] sm:$0xff]
  %v14 = vld [vmem:[%s1] sm:$0xff]
  %v15 = vld [vmem:[%s1 + $0x8] sm:$0xff]
  %v16 = vld [vmem:[%s1 + $0x10] sm:$0xff]
  %v17 = vld [vmem:[%s1 + $0x18] sm:$0xff]
  %v18 = vld [vmem:[%s1 + $0x20] sm:$0xff]
  %v19 = vld [vmem:[%s1 + $0x28] sm:$0xff]
  %v20 = vld [vmem:[%s1 + $0x30] sm:$0xff]
  %v21 = vld [vmem:[%s1 + $0x38] sm:$0xff]
  %vm22 = vcmask 523264
  %v24 = vsel %vm22, %v13, 0
  %26 = vmatprep.subr.mxu0 0.0
  %27 = vmatpush1.msra.mxu0 0.0
  %28 = vmatprep.subr.mxu0 0.0
  %29 = vmatpush1.msra.mxu0 0.0
  %30 = vmatprep.subr.mxu0 0.0
  %31 = vmatpush1.msra.mxu0 0.0
  %32 = vmatprep.subr.mxu0 0.0
  %33 = vmatpush1.msra.mxu0 0.0
  %34 = vmatprep.subr.mxu0 0.0
  %35 = vmatpush1.msra.mxu0 0.0
  %36 = vmatprep.subr.mxu0 0.0
  %37 = vmatpush1.msra.mxu0 0.0
  %38 = vmatprep.subr.mxu0 0.0
  %39 = vmatpush1.msra.mxu0 0.0
  %40 = vmatprep.subr.mxu0 0.0
  %41 = vmatpush1.msra.mxu0 0.0
  %42 = vmatprep.subr.mxu0 0.0
  %43 = vmatpush1.msra.mxu0 %v21
  %44 = vmatprep.subr.mxu0 0.0
  %45 = vmatpush1.msra.mxu0 %v20
  %46 = vmatprep.subr.mxu0 0.0
  %47 = vmatpush1.msra.mxu0 %v19
  %48 = vmatprep.subr.mxu0 0.0
  %49 = vmatpush1.msra.mxu0 %v18
  %50 = vmatprep.subr.mxu0 0.0
  %51 = vmatpush1.msra.mxu0 %v17
  %52 = vmatprep.subr.mxu0 0.0
  %53 = vmatpush1.msra.mxu0 %v16
  %54 = vmatprep.subr.mxu0 0.0
  %55 = vmatpush1.msra.mxu0 %v15
  %56 = vmatprep.subr.mxu0 0.0
  %57 = vmatpush1.msra.mxu0 %v14
  %58 = vmatprep.subr.mxu0 0.0
  %59 = vmatpush2.msra.mxu0 0.0
  %60 = vmatprep.subr.mxu0 0.0
  %61 = vmatpush2.msra.mxu0 0.0
  %62 = vmatprep.subr.mxu0 0.0
  %63 = vmatpush2.msra.mxu0 0.0
  %64 = vmatprep.subr.mxu0 0.0
  %65 = vmatpush2.msra.mxu0 0.0
  %66 = vmatprep.subr.mxu0 0.0
  %67 = vmatpush2.msra.mxu0 0.0
  %68 = vmatprep.subr.mxu0 0.0
  %69 = vmatpush2.msra.mxu0 0.0
  %70 = vmatprep.subr.mxu0 0.0
  %71 = vmatpush2.msra.mxu0 0.0
  %72 = vmatprep.subr.mxu0 0.0
  %73 = vmatpush2.msra.mxu0 0.0
  %74 = vmatprep.subr.mxu0 0.0
  %75 = vmatpush2.msra.mxu0 0.0
  %76 = vmatprep.subr.mxu0 0.0
  %77 = vmatpush2.msra.mxu0 0.0
  %78 = vmatprep.subr.mxu0 0.0
  %79 = vmatpush2.msra.mxu0 0.0
  %80 = vmatprep.subr.mxu0 0.0
  %81 = vmatpush2.msra.mxu0 0.0
  %82 = vmatprep.subr.mxu0 0.0
  %83 = vmatpush2.msra.mxu0 0.0
  %84 = vmatprep.subr.mxu0 0.0
  %85 = vmatpush2.msra.mxu0 0.0
  %86 = vmatprep.subr.mxu0 0.0
  %87 = vmatpush2.msra.mxu0 0.0
  %88 = vmatprep.subr.mxu0 0.0
  %89 = vmatpush2.msra.mxu0 0.0
  %90 = vmatprep.mubr.f32.mxu0 0.0
  %91 = vmatmul.mubr.f32.gmra.mxu0 %v24
  %v92 = vpop.f32.mrf.mxu0
  %v93 = vadd.f32 0.0, %v92
  %v94 = vpop.f32.mrf.mxu0
  %95 = vdwg.mxu0
  %96 = vst [vmem:[%s2] sm:$0xff] %v93
  %p97 = scmp.eq.s32.totalorder 0, 0
  // Predicated region
  $region10: #{basic_block_forward.8} parent=0 // pred_check
    %p98 = pneg %p97
  $region11: #{basic_block_forward.8} parent=0 // pred_check_branch
    %100 = sbr.rel (%p98) target = $region13
  $region12: #{basic_block_forward.8} parent=0 // pred_region
    %101 = vst [vmem:[%s3] sm:$0x3] 0.0
  $region13: #{basic_block_forward.8} parent=0 // pred_fallthru
    _
  %v102 = vrot.slane %v93, 4
  %v103 = vadd.f32 %v93, %v102
  %v104 = vrot.slane %v103, 2
  %v105 = vadd.f32 %v103, %v104
  %v106 = vrot.slane %v105, 1
  %v107 = vadd.f32 %v105, %v106
  %v108 = vmul.f32 %v93, %v93
  %v109 = vrot.slane %v108, 4
  %v110 = vadd.f32 %v108, %v109
  %v111 = vrot.slane %v110, 2
  %v112 = vadd.f32 %v110, %v111
  %v113 = vrot.slane %v112, 1
  %v114 = vadd.f32 %v112, %v113
  %v115 = vld [vmem:[%s3] sm:$0x3]
  %vm116 = vcmask 1040384
  %v117 = vsel %vm116, %v107, %v114
  %v118 = vadd.f32 %v115, %v117
  %119 = vst [vmem:[%s3] sm:$0x3] %v118
  // Predicated region
  $region14: #{basic_block_forward.8} parent=0 // pred_check
    _
  $region15: #{basic_block_forward.8} parent=0 // pred_check_branch
    %121 = sbr.rel (0) target = $region17
  $region16: #{basic_block_forward.8} parent=0 // pred_region
    _
  $region17: #{basic_block_forward.8} parent=0 // pred_fallthru
    _
  // Predicated region
  $region18: #{basic_block_forward.8} parent=0 // pred_check
    _
  $region19: #{basic_block_forward.8} parent=0 // pred_check_branch
    %123 = sbr.rel (0) target = $region21
  $region20: #{basic_block_forward.8} parent=0 // pred_region
    _
  $region21: #{basic_block_forward.8} parent=0 // pred_fallthru
    _
  // Predicated region
  $region22: #{basic_block_forward.8} parent=0 // pred_check
    _
  $region23: #{basic_block_forward.8} parent=0 // pred_check_branch
    %125 = sbr.rel (0) target = $region25
  $region24: #{basic_block_forward.8} parent=0 // pred_region
    _
  $region25: #{basic_block_forward.8} parent=0 // pred_fallthru
    _
  // Predicated region
  $region26: #{basic_block_forward.8} parent=0 // pred_check
    _
  $region27: #{basic_block_forward.8} parent=0 // pred_check_branch
    %127 = sbr.rel (0) target = $region29
  $region28: #{basic_block_forward.8} parent=0 // pred_region
    _
  $region29: #{basic_block_forward.8} parent=0 // pred_fallthru
    _

// kernel: basic_block_forward.9
$region0: #{basic_block_forward.9}
  #allocation0 [shape = 'u32[]', space=smem, size = 0x4, offset = 0x4, fixed_abs, tag = 'smem constant byte address 0x4 - core index']
  #allocation1 [shape = 'u32[144,128]{1,0:T(1,128)}', space=vmem, size = 0x12000, scoped, tag = 'internal scratch']
  %s0 = inlined_call_operand.vmem [shape: f32[8,128], index: 0, kind: input, shape index: {}]
  %s1 = inlined_call_operand.vmem [shape: f32[8,128], index: 1, kind: input, shape index: {}]
  %s2 = inlined_call_operand.vmem [shape: f32[3,128], index: 2, kind: input, shape index: {}]
  %s3 = inlined_call_operand.vmem [shape: f32[8,128], index: 3, kind: output, shape index: {}]
  %s4 = sld [smem:[#allocation0]]
  $region22: #{basic_block_forward.9} parent=0
    _
  %s6 = ssub.s32 1, %s4
  %s7 = scalar_select 0, %s6, %s4
  // Predicated region
  $region2: #{basic_block_forward.9} parent=0 // pred_check
    _
  $region3: #{basic_block_forward.9} parent=0 // pred_check_branch
    %9 = sbr.rel (0) target = $region5
  $region4: #{basic_block_forward.9} parent=0 // pred_region
    _
  $region5: #{basic_block_forward.9} parent=0 // pred_fallthru
    _
  // Predicated region
  $region6: #{basic_block_forward.9} parent=0 // pred_check
    _
  $region7: #{basic_block_forward.9} parent=0 // pred_check_branch
    %11 = sbr.rel (0) target = $region9
  $region8: #{basic_block_forward.9} parent=0 // pred_region
    _
  $region9: #{basic_block_forward.9} parent=0 // pred_fallthru
    _
  // Predicated region
  $region10: #{basic_block_forward.9} parent=0 // pred_check
    _
  $region11: #{basic_block_forward.9} parent=0 // pred_check_branch
    %13 = sbr.rel (0) target = $region13
  $region12: #{basic_block_forward.9} parent=0 // pred_region
    _
  $region13: #{basic_block_forward.9} parent=0 // pred_fallthru
    _
  %v14 = vld [vmem:[%s2] sm:$0x7]
  %v15 = vld [vmem:[%s0] sm:$0xff]
  %v16 = vlaneseq
  %v17 = vshrl.u32 %v16, 7
  %v18 = vsub.s32 0, %v17
  %v19 = vrot.slane %v14, %v18
  %v20 = vmul.f32 %v15, %v19
  %v21 = vld [vmem:[%s1] sm:$0xff]
  %v22 = vlaneseq
  %v23 = vshrl.u32 %v22, 7
  %v24 = vsub.s32 1, %v23
  %v25 = vrot.slane %v14, %v24
  %v26 = vmul.f32 %v21, %v25
  %v27 = vadd.f32 %v20, %v26
  %v28 = vlaneseq
  %v29 = vshrl.u32 %v28, 7
  %v30 = vsub.s32 2, %v29
  %v31 = vrot.slane %v14, %v30
  %v32 = vadd.f32 %v27, %v31
  %v33 = vmax.f32 %v32, 0.0
  %34 = vst [vmem:[%s3] sm:$0xff] %v33
  // Predicated region
  $region14: #{basic_block_forward.9} parent=0 // pred_check
    _
  $region15: #{basic_block_forward.9} parent=0 // pred_check_branch
    %36 = sbr.rel (0) target = $region17
  $region16: #{basic_block_forward.9} parent=0 // pred_region
    _
  $region17: #{basic_block_forward.9} parent=0 // pred_fallthru
    _
  // Predicated region
  $region18: #{basic_block_forward.9} parent=0 // pred_check
    _
  $region19: #{basic_block_forward.9} parent=0 // pred_check_branch
    %38 = sbr.rel (0) target = $region21
  $region20: #{basic_block_forward.9} parent=0 // pred_region
    _
  $region21: #{basic_block_forward.9} parent=0 // pred_fallthru
    _

</llo_original>
